<compile_context>
chip_gen: v7x
topology: tpu7x:2x2x1
jax: 0.10.0
libtpu: 0.0.40
codegen_flags: <defaults>
</compile_context>

<pallas_src>
import functools

import jax
import jax.numpy as jnp
from jax import lax
from jax.experimental import pallas as pl
from jax.experimental.pallas import tpu as pltpu

FEAT = 512        # backbone output channels (fixed by nn.Linear(512, 64))
HID = 64          # classifier hidden width
NUM_CLASSES = 1   # default num_classes (binary classification)
LANE = 128


def _pool_kernel(x_ref, wb_ref, bb_ref, pooled_ref, acc_ref, *, hw_total, chunk):
    """Streaming backbone stand-in (1x1 conv + ReLU) + global average pool.

    x_ref      : [Cin, t_hw]   bf16  -- one batch row, one spatial tile (HW on lanes)
    wb_ref     : [FEAT, Cin]   bf16  -- synthetic backbone weights (1x1 conv)
    bb_ref     : [FEAT, 1]     f32   -- synthetic backbone bias
    pooled_ref : [1, FEAT]     f32   -- per-row pooled output (written at finalize)
    acc_ref    : [FEAT, LANE]  f32   -- lane-aligned running spatial-sum scratch
    """
    s = pl.program_id(1)
    n_s = pl.num_programs(1)
    t_hw = x_ref.shape[-1]
    n_chunks = max(t_hw // chunk, 1)

    @pl.when(s == 0)
    def _init():
        acc_ref[...] = jnp.zeros_like(acc_ref)

    def process(masked):
        wb = wb_ref[...]
        bb = bb_ref[...]
        for c in range(n_chunks):
            xc = x_ref[:, c * chunk:(c + 1) * chunk]            # [Cin, chunk] bf16
            # Backbone 1x1 conv on the MXU (bf16 in, f32 accumulate) + bias + ReLU.
            feat = jnp.dot(wb, xc, preferred_element_type=jnp.float32)
            feat = jnp.maximum(feat + bb, 0.0)                   # [FEAT, chunk] f32
            if masked:
                # Ragged last tile: zero columns past HW (select -> NaN-safe).
                col = (s * t_hw + c * chunk
                       + lax.broadcasted_iota(jnp.int32, feat.shape, 1))
                feat = jnp.where(col < hw_total, feat, 0.0)
            # Spatial-sum accumulation as pure lane-aligned VPU adds.
            if chunk % LANE == 0:
                part = feat[:, 0:LANE]
                for g in range(1, chunk // LANE):
                    part = part + feat[:, g * LANE:(g + 1) * LANE]
                acc_ref[...] += part
            else:   # tiny-HW edge case: chunk == t_hw == HW < 128
                acc_ref[:, :chunk] += feat

    if hw_total % t_hw != 0:
        # Only the last spatial step can be ragged: interior steps run unmasked.
        @pl.when(s < n_s - 1)
        def _interior():
            process(False)

        @pl.when(s == n_s - 1)
        def _last():
            process(True)
    else:
        process(False)

    @pl.when(s == n_s - 1)
    def _finalize():
        # One lane reduction per batch row: [FEAT, LANE] -> [1, FEAT].
        ones = jnp.ones((1, LANE), jnp.float32)
        total = lax.dot_general(ones, acc_ref[...], (((1,), (1,)), ((), ())),
                                preferred_element_type=jnp.float32)
        pooled_ref[...] = (total * (1.0 / hw_total)).astype(pooled_ref.dtype)


def _head_kernel(p_ref, w1_ref, b1_ref, w2_ref, b2_ref, out_ref):
    """Classifier head over the whole batch: Linear(512,64) -> ReLU -> Linear(64,NC)."""
    h = jnp.dot(p_ref[...], w1_ref[...], preferred_element_type=jnp.float32)
    h = jnp.maximum(h + b1_ref[...], 0.0)
    # Dropout(0.5) is identity in eval mode.
    # TODO(synk): train-mode stochastic dropout not implemented (inference only).
    out = jnp.dot(h, w2_ref[...], preferred_element_type=jnp.float32) + b2_ref[...]
    out_ref[...] = out.astype(out_ref.dtype)


def _gen_aware_limits():
    """(spatial-tile cap, vmem_limit_bytes) based on the TPU generation's VMEM."""
    try:
        vmem = pltpu.get_tpu_info().vmem_capacity_bytes
    except Exception:
        vmem = None
    if vmem is not None and vmem <= 96 * 1024 * 1024:      # v7x-class (64 MiB / TC)
        return 4096, 32 * 1024 * 1024
    return 8192, 64 * 1024 * 1024                          # v5e / v6e (128 MiB)


def _choose_tiles(hw, t_hw, chunk, cap):
    if t_hw is None:
        if hw < LANE:
            t_hw = hw
        elif hw < 4 * LANE:
            t_hw = (hw // LANE) * LANE
        else:
            t_hw = (min(hw, cap) // 512) * 512
    if chunk is None:
        if t_hw < LANE:
            chunk = t_hw
        else:
            chunk = next((c for c in (512, 256, 128) if t_hw % c == 0), t_hw)
    assert t_hw % chunk == 0, (t_hw, chunk)
    assert chunk % LANE == 0 or t_hw < LANE, (t_hw, chunk)
    return t_hw, chunk


def basic_classifier_forward(x_nchw, params, *, t_hw=None, chunk=None):
    """x_nchw: [B, Cin, H, W] float32 (PyTorch layout). Returns [B, num_classes]."""
    wb, bb, w1, b1, w2, b2 = params
    B, Cin, H, W = x_nchw.shape
    HW = H * W
    num_classes = w2.shape[1]
    nc_pad = max(LANE, ((num_classes + LANE - 1) // LANE) * LANE)

    cap, vmem_limit = _gen_aware_limits()
    t_hw, chunk = _choose_tiles(HW, t_hw, chunk, cap)
    n_s = pl.cdiv(HW, t_hw)

    # Channels leading, spatial flattened onto the lane axis (no NCHW transpose).
    # bf16 backbone inputs: native MXU rate + half the only large HBM stream.
    x = x_nchw.reshape(B, Cin, HW).astype(jnp.bfloat16)
    wb16 = wb.astype(jnp.bfloat16)

    # --- Stage 1: streaming backbone + global average pool -> pooled [B, FEAT] ---
    # TODO(synk): for B==1 on v7x, split the spatial axis across both TensorCores
    # (per-core partial accumulators) instead of relying on the batch axis.
    pooled = pl.pallas_call(
        functools.partial(_pool_kernel, hw_total=HW, chunk=chunk),
        out_shape=jax.ShapeDtypeStruct((B, 1, FEAT), jnp.float32),
        grid=(B, n_s),
        in_specs=[
            # streamed input tile: one batch row x one spatial tile (lane-dense)
            pl.BlockSpec((None, Cin, t_hw), lambda b, s: (b, 0, s)),
            # backbone weights/bias: constant block index -> fetched once, VMEM-resident
            pl.BlockSpec((FEAT, Cin), lambda b, s: (0, 0)),
            pl.BlockSpec((FEAT, 1), lambda b, s: (0, 0)),
        ],
        out_specs=pl.BlockSpec((None, 1, FEAT), lambda b, s: (b, 0, 0)),
        scratch_shapes=[pltpu.VMEM((FEAT, LANE), jnp.float32)],
        compiler_params=pltpu.CompilerParams(
            dimension_semantics=("parallel", "arbitrary"),
            vmem_limit_bytes=vmem_limit),
    )(x, wb16, bb)
    pooled = pooled.reshape(B, FEAT)

    # --- Stage 2: classifier head over the whole batch (fills MXU sublanes) ---
    # Head output lane-padded to 128 so the single store is lane-dense.
    w2p = jnp.zeros((HID, nc_pad), w2.dtype).at[:, :num_classes].set(w2)
    b2p = jnp.zeros((1, nc_pad), b2.dtype).at[:, :num_classes].set(b2)

    out = pl.pallas_call(
        _head_kernel,
        out_shape=jax.ShapeDtypeStruct((B, nc_pad), jnp.float32),
        grid=(1,),
        in_specs=[
            pl.BlockSpec((B, FEAT), lambda i: (0, 0)),
            pl.BlockSpec((FEAT, HID), lambda i: (0, 0)),
            pl.BlockSpec((1, HID), lambda i: (0, 0)),
            pl.BlockSpec((HID, nc_pad), lambda i: (0, 0)),
            pl.BlockSpec((1, nc_pad), lambda i: (0, 0)),
        ],
        out_specs=pl.BlockSpec((B, nc_pad), lambda i: (0, 0)),
        compiler_params=pltpu.CompilerParams(
            dimension_semantics=("arbitrary",)),
    )(pooled, w1, b1, w2p, b2p)

    return out[:, :num_classes]


def init_params(key, cin, num_classes=NUM_CLASSES):
    """Deterministic parameter init (shapes implied by the module __init__)."""
    k = jax.random.split(key, 6)
    wb = jax.random.normal(k[0], (FEAT, cin), jnp.float32) * 0.05   # [out, in]
    bb = jax.random.normal(k[1], (FEAT, 1), jnp.float32) * 0.01
    w1 = jax.random.normal(k[2], (FEAT, HID), jnp.float32) * 0.05   # [in, out]
    b1 = jax.random.normal(k[3], (1, HID), jnp.float32) * 0.01
    w2 = jax.random.normal(k[4], (HID, num_classes), jnp.float32) * 0.05
    b2 = jax.random.normal(k[5], (1, num_classes), jnp.float32) * 0.01
    return wb, bb, w1, b1, w2, b2


def reference_forward(x_nchw, params):
    """Pure-JAX reference (same bf16 backbone inputs as the kernel; f32 head)."""
    wb, bb, w1, b1, w2, b2 = params
    B, Cin, H, W = x_nchw.shape
    x = x_nchw.reshape(B, Cin, H * W).astype(jnp.bfloat16)
    feat = jnp.einsum("fc,bch->bfh", wb.astype(jnp.bfloat16), x,
                      preferred_element_type=jnp.float32)
    feat = jnp.maximum(feat + bb[None], 0.0)
    pooled = jnp.mean(feat, axis=-1)                 # [B, 512]
    h = jnp.maximum(pooled @ w1 + b1, 0.0)
    return h @ w2 + b2


if __name__ == "__main__":
    key = jax.random.PRNGKey(0)
    kx1, kx2, kp = jax.random.split(key, 3)

    B, Cin = 2, 4
    params = init_params(kp, Cin)

    x1 = jax.random.normal(kx1, (B, Cin, 16, 16), jnp.float32)   # HW = 256
    x2 = jax.random.normal(kx2, (B, Cin, 24, 24), jnp.float32)   # HW = 576

    ref1 = reference_forward(x1, params)
    ref2 = reference_forward(x2, params)

    # (a) default tiling (single spatial step)
    # (b) t_hw=128 -> grid (2, 2): exercises streaming accumulation + finalize
    # (c) t_hw=256, chunk=128 on HW=576 -> ragged last tile + multi-chunk path
    cases = [
        (x1, ref1, dict()),
        (x1, ref1, dict(t_hw=128)),
        (x2, ref2, dict(t_hw=256, chunk=128)),
    ]
    for xi, refi, kw in cases:
        out = jax.block_until_ready(basic_classifier_forward(xi, params, **kw))
        assert out.shape == (B, NUM_CLASSES), out.shape
        assert jnp.allclose(out, refi, atol=1e-4, rtol=1e-4), (kw, out, refi)

    print("KERNEL_OK")
</pallas_src>

<mosaic_0001>
module attributes {stable_mosaic.version = 11 : i64} {
  func.func @_pool_kernel(%arg0: i32, %arg1: i32, %arg2: memref<1x4x256xbf16, #tpu.memory_space<vmem>>, %arg3: memref<512x4xbf16, #tpu.memory_space<vmem>>, %arg4: memref<512x1xf32, #tpu.memory_space<vmem>>, %arg5: memref<1x1x512xf32, #tpu.memory_space<vmem>>, %arg6: memref<512x128xf32, #tpu.memory_space<vmem>>) attributes {dimension_semantics = [#tpu.dimension_semantics<parallel>, #tpu.dimension_semantics<arbitrary>], iteration_bounds = array<i64: 2, 1>, scalar_prefetch = 0 : i64, scratch_operands = 1 : i64, tpu.core_type = #tpu.core_type<tc>, window_params = [{transform_indices = @transform_0, window_bounds = array<i64: 1, 4, 256>}, {pipeline_mode = #tpu.pipeline_mode<synchronous>, transform_indices = @transform_1, window_bounds = array<i64: 512, 4>}, {pipeline_mode = #tpu.pipeline_mode<synchronous>, transform_indices = @transform_2, window_bounds = array<i64: 512, 1>}, {transform_indices = @transform_3, window_bounds = array<i64: 1, 1, 512>}]} {
    %c0_i32 = arith.constant 0 : i32
    %0 = arith.cmpi eq, %arg1, %c0_i32 : i32
    %1 = arith.extui %0 : i1 to i32
    %c0_i32_0 = arith.constant 0 : i32
    %2 = arith.cmpi ne, %1, %c0_i32_0 : i32
    scf.if %2 {
      %cst_14 = arith.constant 0.000000e+00 : f32
      %21 = vector.broadcast %cst_14 : f32 to vector<512x128xf32>
      %c0_15 = arith.constant 0 : index
      %c0_16 = arith.constant 0 : index
      %22 = vector.load %arg6[%c0_15, %c0_16] : memref<512x128xf32, #tpu.memory_space<vmem>>, vector<512x128xf32>
      tpu.vector_store %arg6[%c0_15, %c0_16], %21 {strides = array<i32>} : memref<512x128xf32, #tpu.memory_space<vmem>>, vector<512x128xf32>,
    } else {
    }
    %c0 = arith.constant 0 : index
    %c0_1 = arith.constant 0 : index
    %3 = vector.load %arg3[%c0, %c0_1] : memref<512x4xbf16, #tpu.memory_space<vmem>>, vector<512x4xbf16>
    %c0_2 = arith.constant 0 : index
    %c0_3 = arith.constant 0 : index
    %4 = vector.load %arg4[%c0_2, %c0_3] : memref<512x1xf32, #tpu.memory_space<vmem>>, vector<512x1xf32>
    %c0_4 = arith.constant 0 : index
    %c0_5 = arith.constant 0 : index
    %c0_6 = arith.constant 0 : index
    %5 = vector.load %arg2[%c0_4, %c0_5, %c0_6] : memref<1x4x256xbf16, #tpu.memory_space<vmem>>, vector<1x4x256xbf16>
    %6 = vector.shape_cast %5 : vector<1x4x256xbf16> to vector<4x256xbf16>
    %cst = arith.constant dense<0.000000e+00> : vector<512x256xf32>
    %7 = tpu.matmul %3, %6, %cst {dimension_numbers = #tpu.dot_dimension_numbers<[1], [0], [0], [1], [0, 0, 1, 1], [], []>} : vector<512x4xbf16>, vector<4x256xbf16>, vector<512x256xf32> -> vector<512x256xf32>
    %8 = vector.broadcast %4 : vector<512x1xf32> to vector<512x256xf32>
    %9 = arith.addf %7, %8 : vector<512x256xf32>
    %cst_7 = arith.constant 0.000000e+00 : f32
    %10 = vector.broadcast %cst_7 : f32 to vector<512x256xf32>
    %11 = arith.maximumf %9, %10 : vector<512x256xf32>
    %12 = vector.extract_strided_slice %11 {offsets = [0, 0], sizes = [512, 128], strides = [1, 1]} : vector<512x256xf32> to vector<512x128xf32>
    %13 = vector.extract_strided_slice %11 {offsets = [0, 128], sizes = [512, 128], strides = [1, 1]} : vector<512x256xf32> to vector<512x128xf32>
    %14 = arith.addf %12, %13 : vector<512x128xf32>
    %c0_8 = arith.constant 0 : index
    %c0_9 = arith.constant 0 : index
    %15 = vector.load %arg6[%c0_8, %c0_9] : memref<512x128xf32, #tpu.memory_space<vmem>>, vector<512x128xf32>
    %16 = arith.addf %15, %14 : vector<512x128xf32>
    %c0_10 = arith.constant 0 : index
    %c0_11 = arith.constant 0 : index
    %17 = vector.load %arg6[%c0_10, %c0_11] : memref<512x128xf32, #tpu.memory_space<vmem>>, vector<512x128xf32>
    tpu.vector_store %arg6[%c0_10, %c0_11], %16 {strides = array<i32>} : memref<512x128xf32, #tpu.memory_space<vmem>>, vector<512x128xf32>,
    %c0_i32_12 = arith.constant 0 : i32
    %18 = arith.cmpi eq, %arg1, %c0_i32_12 : i32
    %19 = arith.extui %18 : i1 to i32
    %c0_i32_13 = arith.constant 0 : i32
    %20 = arith.cmpi ne, %19, %c0_i32_13 : i32
    scf.if %20 {
      %cst_14 = arith.constant 1.000000e+00 : f32
      %21 = vector.broadcast %cst_14 : f32 to vector<1x128xf32>
      %c0_15 = arith.constant 0 : index
      %c0_16 = arith.constant 0 : index
      %22 = vector.load %arg6[%c0_15, %c0_16] : memref<512x128xf32, #tpu.memory_space<vmem>>, vector<512x128xf32>
      %cst_17 = arith.constant dense<0.000000e+00> : vector<1x512xf32>
      %23 = tpu.matmul %21, %22, %cst_17 {dimension_numbers = #tpu.dot_dimension_numbers<[1], [1], [0], [0], [0, 0, 1, 0], [], []>} : vector<1x128xf32>, vector<512x128xf32>, vector<1x512xf32> -> vector<1x512xf32>
      %cst_18 = arith.constant 3.906250e-03 : f32
      %24 = vector.broadcast %cst_18 : f32 to vector<1x512xf32>
      %25 = arith.mulf %23, %24 : vector<1x512xf32>
      %c0_19 = arith.constant 0 : index
      %c0_20 = arith.constant 0 : index
      %c0_21 = arith.constant 0 : index
      %26 = vector.load %arg5[%c0_19, %c0_20, %c0_21] : memref<1x1x512xf32, #tpu.memory_space<vmem>>, vector<1x1x512xf32>
      %27 = vector.shape_cast %26 : vector<1x1x512xf32> to vector<1x512xf32>
      %28 = vector.shape_cast %25 : vector<1x512xf32> to vector<1x1x512xf32>
      tpu.vector_store %arg5[%c0_19, %c0_20, %c0_21], %28 {strides = array<i32>} : memref<1x1x512xf32, #tpu.memory_space<vmem>>, vector<1x1x512xf32>,
    } else {
    }
    return
  }
  func.func @transform_0(%arg0: i32, %arg1: i32) -> (i32, i32, i32) {
    %c0_i32 = arith.constant 0 : i32
    %c0_i32_0 = arith.constant 0 : i32
    return %arg0, %c0_i32, %arg1 : i32, i32, i32
  }
  func.func @transform_1(%arg0: i32, %arg1: i32) -> (i32, i32) {
    %c0_i32 = arith.constant 0 : i32
    %c0_i32_0 = arith.constant 0 : i32
    %c0_i32_1 = arith.constant 0 : i32
    return %c0_i32, %c0_i32_0 : i32, i32
  }
  func.func @transform_2(%arg0: i32, %arg1: i32) -> (i32, i32) {
    %c0_i32 = arith.constant 0 : i32
    %c0_i32_0 = arith.constant 0 : i32
    %c0_i32_1 = arith.constant 0 : i32
    return %c0_i32, %c0_i32_0 : i32, i32
  }
  func.func @transform_3(%arg0: i32, %arg1: i32) -> (i32, i32, i32) {
    %c0_i32 = arith.constant 0 : i32
    %c0_i32_0 = arith.constant 0 : i32
    %c0_i32_1 = arith.constant 0 : i32
    return %arg0, %c0_i32, %c0_i32_0 : i32, i32, i32
  }
}

</mosaic_0001>

<llo_original>
// kernel: tpu_custom_call.1
$region0: #{tpu_custom_call.1}
  #allocation0 [shape = 'u32[]', space=smem, size = 0x4, offset = 0x4, fixed_abs, tag = 'smem constant byte address 0x4 - core index']
  #allocation1 [shape = 'u32[144,128]{1,0:T(1,128)}', space=vmem, size = 0x12000, scoped, tag = 'internal scratch']
  #allocation2 [shape = 'f32[512,128]{1,0:T(8,128)}', space=vmem, size = 0x40000, scoped, tag = 'scratch operand']
  %s0 = inlined_call_operand.hbm [shape: bf16[2,4,256], index: 0, kind: input, shape index: {}]
  %s1 = inlined_call_operand.hbm [shape: bf16[512,4], index: 1, kind: input, shape index: {}]
  %s2 = inlined_call_operand.hbm [shape: f32[512,1], index: 2, kind: input, shape index: {}]
  %s3 = inlined_call_operand.hbm [shape: f32[2,1,512], index: 3, kind: output, shape index: {}]
  %s4 = sld [smem:[#allocation0]]
  $region65: #{tpu_custom_call.1} parent=0
    _
  %s6 = ssub.s32 1, %s4
  %s7 = scalar_select 0, %s6, %s4
  $region1: #{tpu_custom_call.1} parent=0
    #allocation3 [shape = 'u8[4096]{0}', space=vmem, size = 0x1000, scoped, tag = 'input window, operand 0']
    #allocation4 [shape = 's32[2]{0}', space=sflag, size = 0x8, scoped, tag = 'scoped memory for tpu_custom_call.1']
    #allocation5 [shape = 's32[2]{0}', space=sflag, size = 0x8, scoped, tag = 'scoped memory for tpu_custom_call.1']
    #allocation6 [shape = 'u8[131072]{0}', space=vmem, size = 0x20000, scoped, tag = 'input window, operand 1, single buffered']
    #allocation7 [shape = 's32[1]{0}', space=sflag, size = 0x4, scoped, tag = 'scoped memory for tpu_custom_call.1']
    #allocation8 [shape = 'u8[262144]{0}', space=vmem, size = 0x40000, scoped, tag = 'input window, operand 2, single buffered']
    #allocation9 [shape = 'u8[4096]{0}', space=vmem, size = 0x1000, scoped, tag = 'output window, operand 0']
    %8 = vsyncpa [#allocation4], 0
    %s9 = scalar_lea.sflag [#allocation4], 1
    %10 = vsyncpa %s9, 0
    %11 = vsyncpa [#allocation7], 0
    %12 = vsyncpa [#allocation5], 0
    %s13 = scalar_lea.sflag [#allocation5], 1
    %14 = vsyncpa %s13, 0
    loop: start=0, step=1, limit=4
    $region2: #{tpu_custom_call.1} parent=1 // loop_pre_header
      _
    $region3: #{tpu_custom_call.1} parent=1 // loop_header
      %s16 = sphi 0, %s20
      %p17 = scmp.ge.s32.totalorder %s16, 4
      %s23 = sphi 0, %s35
      %s24 = sphi 0, %s31
      %s25 = sphi 0, %s23
      %s26 = sphi 0, %s24
      %s27 = sphi 0, %s25
      %s28 = sphi 0, %s26
      %s40 = sphi 0, %s42
      %s43 = sphi 0, %s40
      %s44 = sphi 0, %s43
      %s60 = sphi 0, %s44
      %s64 = sphi 0, %s64
      %s66 = sphi 0, %s64
      %s67 = sphi 0, %s66
      %s81 = sphi 0, %s67
      %s85 = sphi 0, %s85
      %s87 = sphi 0, %s85
      %s88 = sphi 0, %s87
      %s102 = sphi 0, %s88
      %s108 = sphi 0, %s110
      %s111 = sphi 0, %s108
      %s112 = sphi 0, %s111
      %s128 = sphi 0, %s112
    $region4: #{tpu_custom_call.1} parent=1 // loop_header_branch
      %19 = sbr.rel (%p17) target = $region8
    $region5: #{tpu_custom_call.1} parent=1 // loop_body
      %s21 = ssub.s32 %s16, 1
      %s22 = ssub.s32 %s16, 2
      %s29 = sadd.s32 1, %s24
      %p30 = scmp.ge.s32.totalorder %s29, 1
      %s31 = scalar_select %p30, 0, %s29
      %s32 = sadd.s32 1, %s23
      %s33 = scalar_select %p30, %s32, %s23
      %p34 = scmp.ge.s32.totalorder %s33, 2
      %s35 = scalar_select %p34, 0, %s33
      %s36 = ssub.s32 %s23, %s35
      %s37 = ssub.s32 %s24, %s31
      %s38 = sor.u32 %s36, %s37
      %p39 = scmp.eq.s32.totalorder %s38, 0
      %s41 = sadd.s32 %s40, 1
      %s42 = scalar_select %p39, %s40, %s41
      %p45 = pneg %p39
      %p46 = scmp.eq.s32.totalorder %s16, 1
      %p47 = por %p45, %p46
      %p48 = scmp.ne.s32.totalorder %s40, %s43
      %p49 = scmp.eq.s32.totalorder %s16, 0
      %p50 = por %p48, %p49
      %p51 = scmp.ne.s32.totalorder %s40, %s43
      %p52 = scmp.eq.s32.totalorder %s21, 1
      %p53 = por %p51, %p52
      %p54 = scmp.ne.s32.totalorder %s43, %s44
      %p55 = scmp.eq.s32.totalorder %s21, 0
      %p56 = por %p54, %p55
      %p57 = scmp.ne.s32.totalorder %s43, %s44
      %p58 = scmp.eq.s32.totalorder %s22, 1
      %p59 = por %p57, %p58
      %p61 = scmp.ne.s32.totalorder %s44, %s60
      %p62 = scmp.eq.s32.totalorder %s22, 0
      %p63 = por %p61, %p62
      %s65 = sadd.s32 %s64, 1
      %p68 = scmp.eq.s32.totalorder %s16, 1
      %p69 = scmp.ne.s32.totalorder %s64, %s66
      %p70 = scmp.eq.s32.totalorder %s16, 0
      %p71 = por %p69, %p70
      %p72 = scmp.ne.s32.totalorder %s64, %s66
      %p73 = scmp.eq.s32.totalorder %s21, 1
      %p74 = por %p72, %p73
      %p75 = scmp.ne.s32.totalorder %s66, %s67
      %p76 = scmp.eq.s32.totalorder %s21, 0
      %p77 = por %p75, %p76
      %p78 = scmp.ne.s32.totalorder %s66, %s67
      %p79 = scmp.eq.s32.totalorder %s22, 1
      %p80 = por %p78, %p79
      %p82 = scmp.ne.s32.totalorder %s67, %s81
      %p83 = scmp.eq.s32.totalorder %s22, 0
      %p84 = por %p82, %p83
      %s86 = sadd.s32 %s85, 1
      %p89 = scmp.eq.s32.totalorder %s16, 1
      %p90 = scmp.ne.s32.totalorder %s85, %s87
      %p91 = scmp.eq.s32.totalorder %s16, 0
      %p92 = por %p90, %p91
      %p93 = scmp.ne.s32.totalorder %s85, %s87
      %p94 = scmp.eq.s32.totalorder %s21, 1
      %p95 = por %p93, %p94
      %p96 = scmp.ne.s32.totalorder %s87, %s88
      %p97 = scmp.eq.s32.totalorder %s21, 0
      %p98 = por %p96, %p97
      %p99 = scmp.ne.s32.totalorder %s87, %s88
      %p100 = scmp.eq.s32.totalorder %s22, 1
      %p101 = por %p99, %p100
      %p103 = scmp.ne.s32.totalorder %s88, %s102
      %p104 = scmp.eq.s32.totalorder %s22, 0
      %p105 = por %p103, %p104
      %s106 = ssub.s32 %s23, %s35
      %p107 = scmp.eq.s32.totalorder %s106, 0
      %s109 = sadd.s32 %s108, 1
      %s110 = scalar_select %p107, %s108, %s109
      %p113 = pneg %p107
      %p114 = scmp.eq.s32.totalorder %s16, 1
      %p115 = por %p113, %p114
      %p116 = scmp.ne.s32.totalorder %s108, %s111
      %p117 = scmp.eq.s32.totalorder %s16, 0
      %p118 = por %p116, %p117
      %p119 = scmp.ne.s32.totalorder %s108, %s111
      %p120 = scmp.eq.s32.totalorder %s21, 1
      %p121 = por %p119, %p120
      %p122 = scmp.ne.s32.totalorder %s111, %s112
      %p123 = scmp.eq.s32.totalorder %s21, 0
      %p124 = por %p122, %p123
      %p125 = scmp.ne.s32.totalorder %s111, %s112
      %p126 = scmp.eq.s32.totalorder %s22, 1
      %p127 = por %p125, %p126
      %p129 = scmp.ne.s32.totalorder %s112, %s128
      %p130 = scmp.eq.s32.totalorder %s22, 0
      %p131 = por %p129, %p130
      %p132 = scmp.le.s32.totalorder 1, %s16
      %p133 = scmp.lt.s32.totalorder %s16, 3
      %p134 = pnand %p132, %p133
      %p135 = pneg %p134
      // Predicated region
      $region9: #{tpu_custom_call.1} parent=5 // pred_check
        _
      $region10: #{tpu_custom_call.1} parent=5 // pred_check_branch
        %137 = sbr.rel (%p134) target = $region12
      $region11: #{tpu_custom_call.1} parent=5 // pred_region
        %s138 = ssub.s32 %s16, 1
        // Predicated region
        $region13: #{tpu_custom_call.1} parent=11 // pred_check
          %p139 = pneg %p77
        $region14: #{tpu_custom_call.1} parent=11 // pred_check_branch
          %141 = sbr.rel (%p139) target = $region16
        $region15: #{tpu_custom_call.1} parent=11 // pred_region
          %s143 = ssub.s32 4096, 4096
          %144 = vsyncadd [#allocation7], %s143
          %s145 = sshll.u32 [#allocation6], 4
          %s146 = int_to_ptr.vmem [resolvable:$true] %s145
          %151 = dma.hbm_to_vmem [thread:$0]  %s1, 4096, %s146, [#allocation7], 64, 64, 4
        $region16: #{tpu_custom_call.1} parent=11 // pred_fallthru
          _
        // Predicated region
        $region17: #{tpu_custom_call.1} parent=11 // pred_check
          %p152 = pneg %p98
        $region18: #{tpu_custom_call.1} parent=11 // pred_check_branch
          %154 = sbr.rel (%p152) target = $region20
        $region19: #{tpu_custom_call.1} parent=11 // pred_region
          %s156 = ssub.s32 8192, 8192
          %157 = vsyncadd [#allocation7], %s156
          %s158 = sshll.u32 [#allocation8], 4
          %s159 = int_to_ptr.vmem [resolvable:$true] %s158
          %164 = dma.hbm_to_vmem [thread:$0]  %s2, 8192, %s159, [#allocation7], 128, 128, 8
        $region20: #{tpu_custom_call.1} parent=11 // pred_fallthru
          _
      $region12: #{tpu_custom_call.1} parent=5 // pred_fallthru
        _
      %p165 = scmp.lt.s32.totalorder %s16, 2
      // Predicated region
      $region21: #{tpu_custom_call.1} parent=5 // pred_check
        %p166 = pneg %p165
      $region22: #{tpu_custom_call.1} parent=5 // pred_check_branch
        %168 = sbr.rel (%p166) target = $region24
      $region23: #{tpu_custom_call.1} parent=5 // pred_region
        // Predicated region
        $region25: #{tpu_custom_call.1} parent=23 // pred_check
          %p169 = pneg %p50
        $region26: #{tpu_custom_call.1} parent=23 // pred_check_branch
          %171 = sbr.rel (%p169) target = $region28
        $region27: #{tpu_custom_call.1} parent=23 // pred_region
          %s172 = sand.u32 %s40, 1
          %s173 = scalar_lea.sflag [#allocation4], %s172
          %s174 = sand.u32 %s40, 1
          %s175 = smul.addr %s174, 4
          %s176 = scalar_lea.vmem [#allocation3], %s175
          %s177 = smul.u32 2, %s24
          %s179 = ssub.s32 64, 64
          %180 = vsyncadd %s173, %s179
          %s181 = smul.addr %s23, 2
          %s182 = sadd.s32 %s177, %s181
          %s183 = smul.addr %s182, 32
          %s184 = scalar_lea.hbm %s0, %s183
          %s186 = sshll.u32 %s176, 4
          %s187 = int_to_ptr.vmem [resolvable:$true] %s186
          %189 = dma.hbm_to_vmem [thread:$0]  %s184, 64, %s187, %s173
        $region28: #{tpu_custom_call.1} parent=23 // pred_fallthru
          _
      $region24: #{tpu_custom_call.1} parent=5 // pred_fallthru
        _
      %p190 = scmp.le.s32.totalorder 1, %s16
      %p191 = scmp.lt.s32.totalorder %s16, 3
      %p192 = pnand %p190, %p191
      %p193 = pneg %p192
      // Predicated region
      $region29: #{tpu_custom_call.1} parent=5 // pred_check
        _
      $region30: #{tpu_custom_call.1} parent=5 // pred_check_branch
        %195 = sbr.rel (%p192) target = $region32
      $region31: #{tpu_custom_call.1} parent=5 // pred_region
        %s196 = ssub.s32 %s16, 1
        %s197 = sand.u32 %s43, 1
        %s198 = scalar_lea.sflag [#allocation4], %s197
        %s199 = sand.u32 %s43, 1
        %s200 = smul.addr %s199, 4
        %s201 = scalar_lea.vmem [#allocation3], %s200
        // Predicated region
        $region33: #{tpu_custom_call.1} parent=31 // pred_check
          %p202 = pneg %p56
        $region34: #{tpu_custom_call.1} parent=31 // pred_check_branch
          %204 = sbr.rel (%p202) target = $region36
        $region35: #{tpu_custom_call.1} parent=31 // pred_region
          %205 = dma.done %s198, 64
        $region36: #{tpu_custom_call.1} parent=31 // pred_fallthru
          _
        // Predicated region
        $region37: #{tpu_custom_call.1} parent=31 // pred_check
          %p206 = pneg %p77
        $region38: #{tpu_custom_call.1} parent=31 // pred_check_branch
          %208 = sbr.rel (%p206) target = $region40
        $region39: #{tpu_custom_call.1} parent=31 // pred_region
          %209 = dma.done [#allocation7], 4096
        $region40: #{tpu_custom_call.1} parent=31 // pred_fallthru
          _
        // Predicated region
        $region41: #{tpu_custom_call.1} parent=31 // pred_check
          %p210 = pneg %p98
        $region42: #{tpu_custom_call.1} parent=31 // pred_check_branch
          %212 = sbr.rel (%p210) target = $region44
        $region43: #{tpu_custom_call.1} parent=31 // pred_region
          %213 = dma.done [#allocation7], 8192
        $region44: #{tpu_custom_call.1} parent=31 // pred_fallthru
          _
        %s214 = sand.u32 %s43, 1
        %s215 = scalar_lea.sflag [#allocation4], %s214
        %s216 = sand.u32 %s43, 1
        %s217 = smul.addr %s216, 4
        %s218 = scalar_lea.vmem [#allocation3], %s217
        %p219 = pneg %p56
        %p220 = pneg %p53
        %p221 = pneg %p77
        %p222 = pneg %p74
        %p223 = pneg %p98
        %p224 = pneg %p95
        %p225 = pneg %p124
        %p226 = pneg %p121
        %s227 = sand.u32 %s111, 1
        %s228 = scalar_lea.sflag [#allocation5], %s227
        %s229 = sand.u32 %s111, 1
        %s230 = smul.addr %s229, 4
        %s231 = scalar_lea.vmem [#allocation9], %s230
        %s232 = smul.u32 2, %s26
        %p234 = scmp.eq.s32.totalorder %s26, 0
        // Predicated region
        $region45: #{tpu_custom_call.1} parent=31 // pred_check
          %p235 = pneg %p234
        $region46: #{tpu_custom_call.1} parent=31 // pred_check_branch
          %237 = sbr.rel (%p235) target = $region48
        $region47: #{tpu_custom_call.1} parent=31 // pred_region
          %238 = vst [vmem:[#allocation2] sm:$0xff] 0.0
          %239 = vst [vmem:[#allocation2 + $0x8] sm:$0xff] 0.0
          %240 = vst [vmem:[#allocation2 + $0x10] sm:$0xff] 0.0
          %241 = vst [vmem:[#allocation2 + $0x18] sm:$0xff] 0.0
          %242 = vst [vmem:[#allocation2 + $0x20] sm:$0xff] 0.0
          %243 = vst [vmem:[#allocation2 + $0x28] sm:$0xff] 0.0
          %244 = vst [vmem:[#allocation2 + $0x30] sm:$0xff] 0.0
          %245 = vst [vmem:[#allocation2 + $0x38] sm:$0xff] 0.0
          %246 = vst [vmem:[#allocation2 + $0x40] sm:$0xff] 0.0
          %247 = vst [vmem:[#allocation2 + $0x48] sm:$0xff] 0.0
          %248 = vst [vmem:[#allocation2 + $0x50] sm:$0xff] 0.0
          %249 = vst [vmem:[#allocation2 + $0x58] sm:$0xff] 0.0
          %250 = vst [vmem:[#allocation2 + $0x60] sm:$0xff] 0.0
          %251 = vst [vmem:[#allocation2 + $0x68] sm:$0xff] 0.0
          %252 = vst [vmem:[#allocation2 + $0x70] sm:$0xff] 0.0
          %253 = vst [vmem:[#allocation2 + $0x78] sm:$0xff] 0.0
          %254 = vst [vmem:[#allocation2 + $0x80] sm:$0xff] 0.0
          %255 = vst [vmem:[#allocation2 + $0x88] sm:$0xff] 0.0
          %256 = vst [vmem:[#allocation2 + $0x90] sm:$0xff] 0.0
          %257 = vst [vmem:[#allocation2 + $0x98] sm:$0xff] 0.0
          %258 = vst [vmem:[#allocation2 + $0xa0] sm:$0xff] 0.0
          %259 = vst [vmem:[#allocation2 + $0xa8] sm:$0xff] 0.0
          %260 = vst [vmem:[#allocation2 + $0xb0] sm:$0xff] 0.0
          %261 = vst [vmem:[#allocation2 + $0xb8] sm:$0xff] 0.0
          %262 = vst [vmem:[#allocation2 + $0xc0] sm:$0xff] 0.0
          %263 = vst [vmem:[#allocation2 + $0xc8] sm:$0xff] 0.0
          %264 = vst [vmem:[#allocation2 + $0xd0] sm:$0xff] 0.0
          %265 = vst [vmem:[#allocation2 + $0xd8] sm:$0xff] 0.0
          %266 = vst [vmem:[#allocation2 + $0xe0] sm:$0xff] 0.0
          %267 = vst [vmem:[#allocation2 + $0xe8] sm:$0xff] 0.0
          %268 = vst [vmem:[#allocation2 + $0xf0] sm:$0xff] 0.0
          %269 = vst [vmem:[#allocation2 + $0xf8] sm:$0xff] 0.0
          %270 = vst [vmem:[#allocation2 + $0x100] sm:$0xff] 0.0
          %271 = vst [vmem:[#allocation2 + $0x108] sm:$0xff] 0.0
          %272 = vst [vmem:[#allocation2 + $0x110] sm:$0xff] 0.0
          %273 = vst [vmem:[#allocation2 + $0x118] sm:$0xff] 0.0
          %274 = vst [vmem:[#allocation2 + $0x120] sm:$0xff] 0.0
          %275 = vst [vmem:[#allocation2 + $0x128] sm:$0xff] 0.0
          %276 = vst [vmem:[#allocation2 + $0x130] sm:$0xff] 0.0
          %277 = vst [vmem:[#allocation2 + $0x138] sm:$0xff] 0.0
          %278 = vst [vmem:[#allocation2 + $0x140] sm:$0xff] 0.0
          %279 = vst [vmem:[#allocation2 + $0x148] sm:$0xff] 0.0
          %280 = vst [vmem:[#allocation2 + $0x150] sm:$0xff] 0.0
          %281 = vst [vmem:[#allocation2 + $0x158] sm:$0xff] 0.0
          %282 = vst [vmem:[#allocation2 + $0x160] sm:$0xff] 0.0
          %283 = vst [vmem:[#allocation2 + $0x168] sm:$0xff] 0.0
          %284 = vst [vmem:[#allocation2 + $0x170] sm:$0xff] 0.0
          %285 = vst [vmem:[#allocation2 + $0x178] sm:$0xff] 0.0
          %286 = vst [vmem:[#allocation2 + $0x180] sm:$0xff] 0.0
          %287 = vst [vmem:[#allocation2 + $0x188] sm:$0xff] 0.0
          %288 = vst [vmem:[#allocation2 + $0x190] sm:$0xff] 0.0
          %289 = vst [vmem:[#allocation2 + $0x198] sm:$0xff] 0.0
          %290 = vst [vmem:[#allocation2 + $0x1a0] sm:$0xff] 0.0
          %291 = vst [vmem:[#allocation2 + $0x1a8] sm:$0xff] 0.0
          %292 = vst [vmem:[#allocation2 + $0x1b0] sm:$0xff] 0.0
          %293 = vst [vmem:[#allocation2 + $0x1b8] sm:$0xff] 0.0
          %294 = vst [vmem:[#allocation2 + $0x1c0] sm:$0xff] 0.0
          %295 = vst [vmem:[#allocation2 + $0x1c8] sm:$0xff] 0.0
          %296 = vst [vmem:[#allocation2 + $0x1d0] sm:$0xff] 0.0
          %297 = vst [vmem:[#allocation2 + $0x1d8] sm:$0xff] 0.0
          %298 = vst [vmem:[#allocation2 + $0x1e0] sm:$0xff] 0.0
          %299 = vst [vmem:[#allocation2 + $0x1e8] sm:$0xff] 0.0
          %300 = vst [vmem:[#allocation2 + $0x1f0] sm:$0xff] 0.0
          %301 = vst [vmem:[#allocation2 + $0x1f8] sm:$0xff] 0.0
        $region48: #{tpu_custom_call.1} parent=31 // pred_fallthru
          _
        %v302 = vld [vmem:[#allocation6] sm:$0xf]
        %v303 = vld [vmem:[#allocation6 + $0x4] sm:$0xf]
        %v304 = vld [vmem:[#allocation6 + $0x8] sm:$0xf]
        %v305 = vld [vmem:[#allocation6 + $0xc] sm:$0xf]
        %v306 = vld [vmem:[#allocation6 + $0x10] sm:$0xf]
        %v307 = vld [vmem:[#allocation6 + $0x14] sm:$0xf]
        %v308 = vld [vmem:[#allocation6 + $0x18] sm:$0xf]
        %v309 = vld [vmem:[#allocation6 + $0x1c] sm:$0xf]
        %v310 = vld [vmem:[#allocation6 + $0x20] sm:$0xf]
        %v311 = vld [vmem:[#allocation6 + $0x24] sm:$0xf]
        %v312 = vld [vmem:[#allocation6 + $0x28] sm:$0xf]
        %v313 = vld [vmem:[#allocation6 + $0x2c] sm:$0xf]
        %v314 = vld [vmem:[#allocation6 + $0x30] sm:$0xf]
        %v315 = vld [vmem:[#allocation6 + $0x34] sm:$0xf]
        %v316 = vld [vmem:[#allocation6 + $0x38] sm:$0xf]
        %v317 = vld [vmem:[#allocation6 + $0x3c] sm:$0xf]
        %v318 = vld [vmem:[#allocation6 + $0x40] sm:$0xf]
        %v319 = vld [vmem:[#allocation6 + $0x44] sm:$0xf]
        %v320 = vld [vmem:[#allocation6 + $0x48] sm:$0xf]
        %v321 = vld [vmem:[#allocation6 + $0x4c] sm:$0xf]
        %v322 = vld [vmem:[#allocation6 + $0x50] sm:$0xf]
        %v323 = vld [vmem:[#allocation6 + $0x54] sm:$0xf]
        %v324 = vld [vmem:[#allocation6 + $0x58] sm:$0xf]
        %v325 = vld [vmem:[#allocation6 + $0x5c] sm:$0xf]
        %v326 = vld [vmem:[#allocation6 + $0x60] sm:$0xf]
        %v327 = vld [vmem:[#allocation6 + $0x64] sm:$0xf]
        %v328 = vld [vmem:[#allocation6 + $0x68] sm:$0xf]
        %v329 = vld [vmem:[#allocation6 + $0x6c] sm:$0xf]
        %v330 = vld [vmem:[#allocation6 + $0x70] sm:$0xf]
        %v331 = vld [vmem:[#allocation6 + $0x74] sm:$0xf]
        %v332 = vld [vmem:[#allocation6 + $0x78] sm:$0xf]
        %v333 = vld [vmem:[#allocation6 + $0x7c] sm:$0xf]
        %v334 = vld [vmem:[#allocation6 + $0x80] sm:$0xf]
        %v335 = vld [vmem:[#allocation6 + $0x84] sm:$0xf]
        %v336 = vld [vmem:[#allocation6 + $0x88] sm:$0xf]
        %v337 = vld [vmem:[#allocation6 + $0x8c] sm:$0xf]
        %v338 = vld [vmem:[#allocation6 + $0x90] sm:$0xf]
        %v339 = vld [vmem:[#allocation6 + $0x94] sm:$0xf]
        %v340 = vld [vmem:[#allocation6 + $0x98] sm:$0xf]
        %v341 = vld [vmem:[#allocation6 + $0x9c] sm:$0xf]
        %v342 = vld [vmem:[#allocation6 + $0xa0] sm:$0xf]
        %v343 = vld [vmem:[#allocation6 + $0xa4] sm:$0xf]
        %v344 = vld [vmem:[#allocation6 + $0xa8] sm:$0xf]
        %v345 = vld [vmem:[#allocation6 + $0xac] sm:$0xf]
        %v346 = vld [vmem:[#allocation6 + $0xb0] sm:$0xf]
        %v347 = vld [vmem:[#allocation6 + $0xb4] sm:$0xf]
        %v348 = vld [vmem:[#allocation6 + $0xb8] sm:$0xf]
        %v349 = vld [vmem:[#allocation6 + $0xbc] sm:$0xf]
        %v350 = vld [vmem:[#allocation6 + $0xc0] sm:$0xf]
        %v351 = vld [vmem:[#allocation6 + $0xc4] sm:$0xf]
        %v352 = vld [vmem:[#allocation6 + $0xc8] sm:$0xf]
        %v353 = vld [vmem:[#allocation6 + $0xcc] sm:$0xf]
        %v354 = vld [vmem:[#allocation6 + $0xd0] sm:$0xf]
        %v355 = vld [vmem:[#allocation6 + $0xd4] sm:$0xf]
        %v356 = vld [vmem:[#allocation6 + $0xd8] sm:$0xf]
        %v357 = vld [vmem:[#allocation6 + $0xdc] sm:$0xf]
        %v358 = vld [vmem:[#allocation6 + $0xe0] sm:$0xf]
        %v359 = vld [vmem:[#allocation6 + $0xe4] sm:$0xf]
        %v360 = vld [vmem:[#allocation6 + $0xe8] sm:$0xf]
        %v361 = vld [vmem:[#allocation6 + $0xec] sm:$0xf]
        %v362 = vld [vmem:[#allocation6 + $0xf0] sm:$0xf]
        %v363 = vld [vmem:[#allocation6 + $0xf4] sm:$0xf]
        %v364 = vld [vmem:[#allocation6 + $0xf8] sm:$0xf]
        %v365 = vld [vmem:[#allocation6 + $0xfc] sm:$0xf]
        %v366 = vld [vmem:[#allocation8] sm:$0xff]
        %v367 = vld [vmem:[#allocation8 + $0x8] sm:$0xff]
        %v368 = vld [vmem:[#allocation8 + $0x10] sm:$0xff]
        %v369 = vld [vmem:[#allocation8 + $0x18] sm:$0xff]
        %v370 = vld [vmem:[#allocation8 + $0x20] sm:$0xff]
        %v371 = vld [vmem:[#allocation8 + $0x28] sm:$0xff]
        %v372 = vld [vmem:[#allocation8 + $0x30] sm:$0xff]
        %v373 = vld [vmem:[#allocation8 + $0x38] sm:$0xff]
        %v374 = vld [vmem:[#allocation8 + $0x40] sm:$0xff]
        %v375 = vld [vmem:[#allocation8 + $0x48] sm:$0xff]
        %v376 = vld [vmem:[#allocation8 + $0x50] sm:$0xff]
        %v377 = vld [vmem:[#allocation8 + $0x58] sm:$0xff]
        %v378 = vld [vmem:[#allocation8 + $0x60] sm:$0xff]
        %v379 = vld [vmem:[#allocation8 + $0x68] sm:$0xff]
        %v380 = vld [vmem:[#allocation8 + $0x70] sm:$0xff]
        %v381 = vld [vmem:[#allocation8 + $0x78] sm:$0xff]
        %v382 = vld [vmem:[#allocation8 + $0x80] sm:$0xff]
        %v383 = vld [vmem:[#allocation8 + $0x88] sm:$0xff]
        %v384 = vld [vmem:[#allocation8 + $0x90] sm:$0xff]
        %v385 = vld [vmem:[#allocation8 + $0x98] sm:$0xff]
        %v386 = vld [vmem:[#allocation8 + $0xa0] sm:$0xff]
        %v387 = vld [vmem:[#allocation8 + $0xa8] sm:$0xff]
        %v388 = vld [vmem:[#allocation8 + $0xb0] sm:$0xff]
        %v389 = vld [vmem:[#allocation8 + $0xb8] sm:$0xff]
        %v390 = vld [vmem:[#allocation8 + $0xc0] sm:$0xff]
        %v391 = vld [vmem:[#allocation8 + $0xc8] sm:$0xff]
        %v392 = vld [vmem:[#allocation8 + $0xd0] sm:$0xff]
        %v393 = vld [vmem:[#allocation8 + $0xd8] sm:$0xff]
        %v394 = vld [vmem:[#allocation8 + $0xe0] sm:$0xff]
        %v395 = vld [vmem:[#allocation8 + $0xe8] sm:$0xff]
        %v396 = vld [vmem:[#allocation8 + $0xf0] sm:$0xff]
        %v397 = vld [vmem:[#allocation8 + $0xf8] sm:$0xff]
        %v398 = vld [vmem:[#allocation8 + $0x100] sm:$0xff]
        %v399 = vld [vmem:[#allocation8 + $0x108] sm:$0xff]
        %v400 = vld [vmem:[#allocation8 + $0x110] sm:$0xff]
        %v401 = vld [vmem:[#allocation8 + $0x118] sm:$0xff]
        %v402 = vld [vmem:[#allocation8 + $0x120] sm:$0xff]
        %v403 = vld [vmem:[#allocation8 + $0x128] sm:$0xff]
        %v404 = vld [vmem:[#allocation8 + $0x130] sm:$0xff]
        %v405 = vld [vmem:[#allocation8 + $0x138] sm:$0xff]
        %v406 = vld [vmem:[#allocation8 + $0x140] sm:$0xff]
        %v407 = vld [vmem:[#allocation8 + $0x148] sm:$0xff]
        %v408 = vld [vmem:[#allocation8 + $0x150] sm:$0xff]
        %v409 = vld [vmem:[#allocation8 + $0x158] sm:$0xff]
        %v410 = vld [vmem:[#allocation8 + $0x160] sm:$0xff]
        %v411 = vld [vmem:[#allocation8 + $0x168] sm:$0xff]
        %v412 = vld [vmem:[#allocation8 + $0x170] sm:$0xff]
        %v413 = vld [vmem:[#allocation8 + $0x178] sm:$0xff]
        %v414 = vld [vmem:[#allocation8 + $0x180] sm:$0xff]
        %v415 = vld [vmem:[#allocation8 + $0x188] sm:$0xff]
        %v416 = vld [vmem:[#allocation8 + $0x190] sm:$0xff]
        %v417 = vld [vmem:[#allocation8 + $0x198] sm:$0xff]
        %v418 = vld [vmem:[#allocation8 + $0x1a0] sm:$0xff]
        %v419 = vld [vmem:[#allocation8 + $0x1a8] sm:$0xff]
        %v420 = vld [vmem:[#allocation8 + $0x1b0] sm:$0xff]
        %v421 = vld [vmem:[#allocation8 + $0x1b8] sm:$0xff]
        %v422 = vld [vmem:[#allocation8 + $0x1c0] sm:$0xff]
        %v423 = vld [vmem:[#allocation8 + $0x1c8] sm:$0xff]
        %v424 = vld [vmem:[#allocation8 + $0x1d0] sm:$0xff]
        %v425 = vld [vmem:[#allocation8 + $0x1d8] sm:$0xff]
        %v426 = vld [vmem:[#allocation8 + $0x1e0] sm:$0xff]
        %v427 = vld [vmem:[#allocation8 + $0x1e8] sm:$0xff]
        %v428 = vld [vmem:[#allocation8 + $0x1f0] sm:$0xff]
        %v429 = vld [vmem:[#allocation8 + $0x1f8] sm:$0xff]
        %v430 = vld [vmem:[%s201] sm:$0xf]
        %432 = vset.pattern.permute.xlu0 0
        %433 = vperm.xlu0 %432, %v366
        %v434 = vpop.permute.xlu0 %433
        %437 = vset.pattern.permute.xlu0 0
        %438 = vperm.xlu0 %437, %v367
        %v439 = vpop.permute.xlu0 %438
        %442 = vset.pattern.permute.xlu0 0
        %443 = vperm.xlu0 %442, %v368
        %v444 = vpop.permute.xlu0 %443
        %447 = vset.pattern.permute.xlu0 0
        %448 = vperm.xlu0 %447, %v369
        %v449 = vpop.permute.xlu0 %448
        %452 = vset.pattern.permute.xlu0 0
        %453 = vperm.xlu0 %452, %v370
        %v454 = vpop.permute.xlu0 %453
        %457 = vset.pattern.permute.xlu0 0
        %458 = vperm.xlu0 %457, %v371
        %v459 = vpop.permute.xlu0 %458
        %462 = vset.pattern.permute.xlu0 0
        %463 = vperm.xlu0 %462, %v372
        %v464 = vpop.permute.xlu0 %463
        %467 = vset.pattern.permute.xlu0 0
        %468 = vperm.xlu0 %467, %v373
        %v469 = vpop.permute.xlu0 %468
        %472 = vset.pattern.permute.xlu0 0
        %473 = vperm.xlu0 %472, %v374
        %v474 = vpop.permute.xlu0 %473
        %477 = vset.pattern.permute.xlu0 0
        %478 = vperm.xlu0 %477, %v375
        %v479 = vpop.permute.xlu0 %478
        %482 = vset.pattern.permute.xlu0 0
        %483 = vperm.xlu0 %482, %v376
        %v484 = vpop.permute.xlu0 %483
        %487 = vset.pattern.permute.xlu0 0
        %488 = vperm.xlu0 %487, %v377
        %v489 = vpop.permute.xlu0 %488
        %492 = vset.pattern.permute.xlu0 0
        %493 = vperm.xlu0 %492, %v378
        %v494 = vpop.permute.xlu0 %493
        %497 = vset.pattern.permute.xlu0 0
        %498 = vperm.xlu0 %497, %v379
        %v499 = vpop.permute.xlu0 %498
        %502 = vset.pattern.permute.xlu0 0
        %503 = vperm.xlu0 %502, %v380
        %v504 = vpop.permute.xlu0 %503
        %507 = vset.pattern.permute.xlu0 0
        %508 = vperm.xlu0 %507, %v381
        %v509 = vpop.permute.xlu0 %508
        %512 = vset.pattern.permute.xlu0 0
        %513 = vperm.xlu0 %512, %v382
        %v514 = vpop.permute.xlu0 %513
        %517 = vset.pattern.permute.xlu0 0
        %518 = vperm.xlu0 %517, %v383
        %v519 = vpop.permute.xlu0 %518
        %522 = vset.pattern.permute.xlu0 0
        %523 = vperm.xlu0 %522, %v384
        %v524 = vpop.permute.xlu0 %523
        %527 = vset.pattern.permute.xlu0 0
        %528 = vperm.xlu0 %527, %v385
        %v529 = vpop.permute.xlu0 %528
        %532 = vset.pattern.permute.xlu0 0
        %533 = vperm.xlu0 %532, %v386
        %v534 = vpop.permute.xlu0 %533
        %537 = vset.pattern.permute.xlu0 0
        %538 = vperm.xlu0 %537, %v387
        %v539 = vpop.permute.xlu0 %538
        %542 = vset.pattern.permute.xlu0 0
        %543 = vperm.xlu0 %542, %v388
        %v544 = vpop.permute.xlu0 %543
        %547 = vset.pattern.permute.xlu0 0
        %548 = vperm.xlu0 %547, %v389
        %v549 = vpop.permute.xlu0 %548
        %552 = vset.pattern.permute.xlu0 0
        %553 = vperm.xlu0 %552, %v390
        %v554 = vpop.permute.xlu0 %553
        %557 = vset.pattern.permute.xlu0 0
        %558 = vperm.xlu0 %557, %v391
        %v559 = vpop.permute.xlu0 %558
        %562 = vset.pattern.permute.xlu0 0
        %563 = vperm.xlu0 %562, %v392
        %v564 = vpop.permute.xlu0 %563
        %567 = vset.pattern.permute.xlu0 0
        %568 = vperm.xlu0 %567, %v393
        %v569 = vpop.permute.xlu0 %568
        %572 = vset.pattern.permute.xlu0 0
        %573 = vperm.xlu0 %572, %v394
        %v574 = vpop.permute.xlu0 %573
        %577 = vset.pattern.permute.xlu0 0
        %578 = vperm.xlu0 %577, %v395
        %v579 = vpop.permute.xlu0 %578
        %582 = vset.pattern.permute.xlu0 0
        %583 = vperm.xlu0 %582, %v396
        %v584 = vpop.permute.xlu0 %583
        %587 = vset.pattern.permute.xlu0 0
        %588 = vperm.xlu0 %587, %v397
        %v589 = vpop.permute.xlu0 %588
        %592 = vset.pattern.permute.xlu0 0
        %593 = vperm.xlu0 %592, %v398
        %v594 = vpop.permute.xlu0 %593
        %597 = vset.pattern.permute.xlu0 0
        %598 = vperm.xlu0 %597, %v399
        %v599 = vpop.permute.xlu0 %598
        %602 = vset.pattern.permute.xlu0 0
        %603 = vperm.xlu0 %602, %v400
        %v604 = vpop.permute.xlu0 %603
        %607 = vset.pattern.permute.xlu0 0
        %608 = vperm.xlu0 %607, %v401
        %v609 = vpop.permute.xlu0 %608
        %612 = vset.pattern.permute.xlu0 0
        %613 = vperm.xlu0 %612, %v402
        %v614 = vpop.permute.xlu0 %613
        %617 = vset.pattern.permute.xlu0 0
        %618 = vperm.xlu0 %617, %v403
        %v619 = vpop.permute.xlu0 %618
        %622 = vset.pattern.permute.xlu0 0
        %623 = vperm.xlu0 %622, %v404
        %v624 = vpop.permute.xlu0 %623
        %627 = vset.pattern.permute.xlu0 0
        %628 = vperm.xlu0 %627, %v405
        %v629 = vpop.permute.xlu0 %628
        %632 = vset.pattern.permute.xlu0 0
        %633 = vperm.xlu0 %632, %v406
        %v634 = vpop.permute.xlu0 %633
        %637 = vset.pattern.permute.xlu0 0
        %638 = vperm.xlu0 %637, %v407
        %v639 = vpop.permute.xlu0 %638
        %642 = vset.pattern.permute.xlu0 0
        %643 = vperm.xlu0 %642, %v408
        %v644 = vpop.permute.xlu0 %643
        %647 = vset.pattern.permute.xlu0 0
        %648 = vperm.xlu0 %647, %v409
        %v649 = vpop.permute.xlu0 %648
        %652 = vset.pattern.permute.xlu0 0
        %653 = vperm.xlu0 %652, %v410
        %v654 = vpop.permute.xlu0 %653
        %657 = vset.pattern.permute.xlu0 0
        %658 = vperm.xlu0 %657, %v411
        %v659 = vpop.permute.xlu0 %658
        %662 = vset.pattern.permute.xlu0 0
        %663 = vperm.xlu0 %662, %v412
        %v664 = vpop.permute.xlu0 %663
        %667 = vset.pattern.permute.xlu0 0
        %668 = vperm.xlu0 %667, %v413
        %v669 = vpop.permute.xlu0 %668
        %672 = vset.pattern.permute.xlu0 0
        %673 = vperm.xlu0 %672, %v414
        %v674 = vpop.permute.xlu0 %673
        %677 = vset.pattern.permute.xlu0 0
        %678 = vperm.xlu0 %677, %v415
        %v679 = vpop.permute.xlu0 %678
        %682 = vset.pattern.permute.xlu0 0
        %683 = vperm.xlu0 %682, %v416
        %v684 = vpop.permute.xlu0 %683
        %687 = vset.pattern.permute.xlu0 0
        %688 = vperm.xlu0 %687, %v417
        %v689 = vpop.permute.xlu0 %688
        %692 = vset.pattern.permute.xlu0 0
        %693 = vperm.xlu0 %692, %v418
        %v694 = vpop.permute.xlu0 %693
        %697 = vset.pattern.permute.xlu0 0
        %698 = vperm.xlu0 %697, %v419
        %v699 = vpop.permute.xlu0 %698
        %702 = vset.pattern.permute.xlu0 0
        %703 = vperm.xlu0 %702, %v420
        %v704 = vpop.permute.xlu0 %703
        %707 = vset.pattern.permute.xlu0 0
        %708 = vperm.xlu0 %707, %v421
        %v709 = vpop.permute.xlu0 %708
        %712 = vset.pattern.permute.xlu0 0
        %713 = vperm.xlu0 %712, %v422
        %v714 = vpop.permute.xlu0 %713
        %717 = vset.pattern.permute.xlu0 0
        %718 = vperm.xlu0 %717, %v423
        %v719 = vpop.permute.xlu0 %718
        %722 = vset.pattern.permute.xlu0 0
        %723 = vperm.xlu0 %722, %v424
        %v724 = vpop.permute.xlu0 %723
        %727 = vset.pattern.permute.xlu0 0
        %728 = vperm.xlu0 %727, %v425
        %v729 = vpop.permute.xlu0 %728
        %732 = vset.pattern.permute.xlu0 0
        %733 = vperm.xlu0 %732, %v426
        %v734 = vpop.permute.xlu0 %733
        %737 = vset.pattern.permute.xlu0 0
        %738 = vperm.xlu0 %737, %v427
        %v739 = vpop.permute.xlu0 %738
        %742 = vset.pattern.permute.xlu0 0
        %743 = vperm.xlu0 %742, %v428
        %v744 = vpop.permute.xlu0 %743
        %747 = vset.pattern.permute.xlu0 0
        %748 = vperm.xlu0 %747, %v429
        %v749 = vpop.permute.xlu0 %748
        %v815 = vunpack.c.l.b16 %v302
        %v816 = vunpack.c.l.b16 %v303
        %v817 = vunpack.c.l.b16 %v304
        %v818 = vunpack.c.l.b16 %v305
        %v819 = vunpack.c.l.b16 %v306
        %v820 = vunpack.c.l.b16 %v307
        %v821 = vunpack.c.l.b16 %v308
        %v822 = vunpack.c.l.b16 %v309
        %v823 = vunpack.c.l.b16 %v310
        %v824 = vunpack.c.l.b16 %v311
        %v825 = vunpack.c.l.b16 %v312
        %v826 = vunpack.c.l.b16 %v313
        %v827 = vunpack.c.l.b16 %v314
        %v828 = vunpack.c.l.b16 %v315
        %v829 = vunpack.c.l.b16 %v316
        %v830 = vunpack.c.l.b16 %v317
        %v831 = vunpack.c.l.b16 %v318
        %v832 = vunpack.c.l.b16 %v319
        %v833 = vunpack.c.l.b16 %v320
        %v834 = vunpack.c.l.b16 %v321
        %v835 = vunpack.c.l.b16 %v322
        %v836 = vunpack.c.l.b16 %v323
        %v837 = vunpack.c.l.b16 %v324
        %v838 = vunpack.c.l.b16 %v325
        %v839 = vunpack.c.l.b16 %v326
        %v840 = vunpack.c.l.b16 %v327
        %v841 = vunpack.c.l.b16 %v328
        %v842 = vunpack.c.l.b16 %v329
        %v843 = vunpack.c.l.b16 %v330
        %v844 = vunpack.c.l.b16 %v331
        %v845 = vunpack.c.l.b16 %v332
        %v846 = vunpack.c.l.b16 %v333
        %v847 = vunpack.c.l.b16 %v334
        %v848 = vunpack.c.l.b16 %v335
        %v849 = vunpack.c.l.b16 %v336
        %v850 = vunpack.c.l.b16 %v337
        %v851 = vunpack.c.l.b16 %v338
        %v852 = vunpack.c.l.b16 %v339
        %v853 = vunpack.c.l.b16 %v340
        %v854 = vunpack.c.l.b16 %v341
        %v855 = vunpack.c.l.b16 %v342
        %v856 = vunpack.c.l.b16 %v343
        %v857 = vunpack.c.l.b16 %v344
        %v858 = vunpack.c.l.b16 %v345
        %v859 = vunpack.c.l.b16 %v346
        %v860 = vunpack.c.l.b16 %v347
        %v861 = vunpack.c.l.b16 %v348
        %v862 = vunpack.c.l.b16 %v349
        %v863 = vunpack.c.l.b16 %v350
        %v864 = vunpack.c.l.b16 %v351
        %v865 = vunpack.c.l.b16 %v352
        %v866 = vunpack.c.l.b16 %v353
        %v867 = vunpack.c.l.b16 %v354
        %v868 = vunpack.c.l.b16 %v355
        %v869 = vunpack.c.l.b16 %v356
        %v870 = vunpack.c.l.b16 %v357
        %v871 = vunpack.c.l.b16 %v358
        %v872 = vunpack.c.l.b16 %v359
        %v873 = vunpack.c.l.b16 %v360
        %v874 = vunpack.c.l.b16 %v361
        %v875 = vunpack.c.l.b16 %v362
        %v876 = vunpack.c.l.b16 %v363
        %v877 = vunpack.c.l.b16 %v364
        %v878 = vunpack.c.l.b16 %v365
        %v879 = vpack.c.b16 %v816, %v815
        %v880 = vpack.c.b16 %v818, %v817
        %v881 = vpack.c.b16 %v820, %v819
        %v882 = vpack.c.b16 %v822, %v821
        %v883 = vpack.c.b16 %v824, %v823
        %v884 = vpack.c.b16 %v826, %v825
        %v885 = vpack.c.b16 %v828, %v827
        %v886 = vpack.c.b16 %v830, %v829
        %v887 = vpack.c.b16 %v832, %v831
        %v888 = vpack.c.b16 %v834, %v833
        %v889 = vpack.c.b16 %v836, %v835
        %v890 = vpack.c.b16 %v838, %v837
        %v891 = vpack.c.b16 %v840, %v839
        %v892 = vpack.c.b16 %v842, %v841
        %v893 = vpack.c.b16 %v844, %v843
        %v894 = vpack.c.b16 %v846, %v845
        %v895 = vpack.c.b16 %v848, %v847
        %v896 = vpack.c.b16 %v850, %v849
        %v897 = vpack.c.b16 %v852, %v851
        %v898 = vpack.c.b16 %v854, %v853
        %v899 = vpack.c.b16 %v856, %v855
        %v900 = vpack.c.b16 %v858, %v857
        %v901 = vpack.c.b16 %v860, %v859
        %v902 = vpack.c.b16 %v862, %v861
        %v903 = vpack.c.b16 %v864, %v863
        %v904 = vpack.c.b16 %v866, %v865
        %v905 = vpack.c.b16 %v868, %v867
        %v906 = vpack.c.b16 %v870, %v869
        %v907 = vpack.c.b16 %v872, %v871
        %v908 = vpack.c.b16 %v874, %v873
        %v909 = vpack.c.b16 %v876, %v875
        %v910 = vpack.c.b16 %v878, %v877
        %v913 = vunpack.c.l.s4 1983009808
        %v914 = vunpack.c.0.s8 %v913
        %v915 = vlaneseq
        %v916 = vshrl.u32 %v915, 7
        %v917 = vsub.s32 %v914, %v916
        %v918 = vrot.slane %v430, %v917
        %v919 = vcombine.high %v918, %v918
        %vm920 = vcmask 31744
        %v922 = vsel %vm920, %v879, 0
        %v925 = vsel %vm920, %v880, 0
        %v928 = vsel %vm920, %v881, 0
        %v931 = vsel %vm920, %v882, 0
        %v934 = vsel %vm920, %v883, 0
        %v937 = vsel %vm920, %v884, 0
        %v940 = vsel %vm920, %v885, 0
        %v943 = vsel %vm920, %v886, 0
        %v946 = vsel %vm920, %v887, 0
        %v949 = vsel %vm920, %v888, 0
        %v952 = vsel %vm920, %v889, 0
        %v955 = vsel %vm920, %v890, 0
        %v958 = vsel %vm920, %v891, 0
        %v961 = vsel %vm920, %v892, 0
        %v964 = vsel %vm920, %v893, 0
        %v967 = vsel %vm920, %v894, 0
        %v970 = vsel %vm920, %v895, 0
        %v973 = vsel %vm920, %v896, 0
        %v976 = vsel %vm920, %v897, 0
        %v979 = vsel %vm920, %v898, 0
        %v982 = vsel %vm920, %v899, 0
        %v985 = vsel %vm920, %v900, 0
        %v988 = vsel %vm920, %v901, 0
        %v991 = vsel %vm920, %v902, 0
        %v994 = vsel %vm920, %v903, 0
        %v997 = vsel %vm920, %v904, 0
        %v1000 = vsel %vm920, %v905, 0
        %v1003 = vsel %vm920, %v906, 0
        %v1006 = vsel %vm920, %v907, 0
        %v1009 = vsel %vm920, %v908, 0
        %v1012 = vsel %vm920, %v909, 0
        %v1015 = vsel %vm920, %v910, 0
        %vm1017 = vcmask 1041408
        %v1019 = vsel %vm1017, %v918, 0
        %v1022 = vsel %vm1017, %v919, 0
        %1024 = vmatprep.subr.bf16.mxu0 %v1022
        %1025 = vmatpush1.bf16.msra.mxu0 %v1019
        %1026 = vmatprep.subr.bf16.mxu0 0
        %1027 = vmatpush1.bf16.msra.mxu0 0
        %1028 = vmatprep.subr.bf16.mxu0 0
        %1029 = vmatpush1.bf16.msra.mxu0 0
        %1030 = vmatprep.subr.bf16.mxu0 0
        %1031 = vmatpush1.bf16.msra.mxu0 0
        %1032 = vmatprep.subr.bf16.mxu0 0
        %1033 = vmatpush1.bf16.msra.mxu0 0
        %1034 = vmatprep.subr.bf16.mxu0 0
        %1035 = vmatpush1.bf16.msra.mxu0 0
        %1036 = vmatprep.subr.bf16.mxu0 0
        %1037 = vmatpush1.bf16.msra.mxu0 0
        %1038 = vmatprep.subr.bf16.mxu0 0
        %1039 = vmatpush1.bf16.msra.mxu0 0
        %1040 = vmatprep.subr.bf16.mxu0 0
        %1041 = vmatpush1.bf16.msra.mxu0 0
        %1042 = vmatprep.subr.bf16.mxu0 0
        %1043 = vmatpush1.bf16.msra.mxu0 0
        %1044 = vmatprep.subr.bf16.mxu0 0
        %1045 = vmatpush1.bf16.msra.mxu0 0
        %1046 = vmatprep.subr.bf16.mxu0 0
        %1047 = vmatpush1.bf16.msra.mxu0 0
        %1048 = vmatprep.subr.bf16.mxu0 0
        %1049 = vmatpush1.bf16.msra.mxu0 0
        %1050 = vmatprep.subr.bf16.mxu0 0
        %1051 = vmatpush1.bf16.msra.mxu0 0
        %1052 = vmatprep.subr.bf16.mxu0 0
        %1053 = vmatpush1.bf16.msra.mxu0 0
        %1054 = vmatprep.subr.bf16.mxu0 0
        %1055 = vmatpush1.bf16.msra.mxu0 0
        %1056 = vmatprep.mubr.bf16.mxu0 0
        %1057 = vmatmul.mubr.bf16.gmra.mrb[0].mxu0 %v922
        %v1058 = vpop.f32.mrb[0].mxu0
        %v1059 = vadd.f32 %v434, %v1058
        %v1060 = vpop.f32.mrb[0].mxu0
        %v1061 = vadd.f32 %v434, %v1060
        %v1062 = vpop.f32.mrb[0].mxu0
        %v1063 = vadd.f32 %v439, %v1062
        %v1064 = vpop.f32.mrb[0].mxu0
        %v1065 = vadd.f32 %v439, %v1064
        %1066 = vmatprep.mubr.bf16.mxu0 0
        %1067 = vmatmul.mubr.bf16.gmra.mrb[0].mxu0 %v925
        %v1068 = vpop.f32.mrb[0].mxu0
        %v1069 = vadd.f32 %v444, %v1068
        %v1070 = vpop.f32.mrb[0].mxu0
        %v1071 = vadd.f32 %v444, %v1070
        %v1072 = vpop.f32.mrb[0].mxu0
        %v1073 = vadd.f32 %v449, %v1072
        %v1074 = vpop.f32.mrb[0].mxu0
        %v1075 = vadd.f32 %v449, %v1074
        %1076 = vmatprep.mubr.bf16.mxu0 0
        %1077 = vmatmul.mubr.bf16.gmra.mrb[0].mxu0 %v928
        %v1078 = vpop.f32.mrb[0].mxu0
        %v1079 = vadd.f32 %v454, %v1078
        %v1080 = vpop.f32.mrb[0].mxu0
        %v1081 = vadd.f32 %v454, %v1080
        %v1082 = vpop.f32.mrb[0].mxu0
        %v1083 = vadd.f32 %v459, %v1082
        %v1084 = vpop.f32.mrb[0].mxu0
        %v1085 = vadd.f32 %v459, %v1084
        %1086 = vmatprep.mubr.bf16.mxu0 0
        %1087 = vmatmul.mubr.bf16.gmra.mrb[0].mxu0 %v931
        %v1088 = vpop.f32.mrb[0].mxu0
        %v1089 = vadd.f32 %v464, %v1088
        %v1090 = vpop.f32.mrb[0].mxu0
        %v1091 = vadd.f32 %v464, %v1090
        %v1092 = vpop.f32.mrb[0].mxu0
        %v1093 = vadd.f32 %v469, %v1092
        %v1094 = vpop.f32.mrb[0].mxu0
        %v1095 = vadd.f32 %v469, %v1094
        %1096 = vmatprep.mubr.bf16.mxu0 0
        %1097 = vmatmul.mubr.bf16.gmra.mrb[0].mxu0 %v934
        %v1098 = vpop.f32.mrb[0].mxu0
        %v1099 = vadd.f32 %v474, %v1098
        %v1100 = vpop.f32.mrb[0].mxu0
        %v1101 = vadd.f32 %v474, %v1100
        %v1102 = vpop.f32.mrb[0].mxu0
        %v1103 = vadd.f32 %v479, %v1102
        %v1104 = vpop.f32.mrb[0].mxu0
        %v1105 = vadd.f32 %v479, %v1104
        %1106 = vmatprep.mubr.bf16.mxu0 0
        %1107 = vmatmul.mubr.bf16.gmra.mrb[0].mxu0 %v937
        %v1108 = vpop.f32.mrb[0].mxu0
        %v1109 = vadd.f32 %v484, %v1108
        %v1110 = vpop.f32.mrb[0].mxu0
        %v1111 = vadd.f32 %v484, %v1110
        %v1112 = vpop.f32.mrb[0].mxu0
        %v1113 = vadd.f32 %v489, %v1112
        %v1114 = vpop.f32.mrb[0].mxu0
        %v1115 = vadd.f32 %v489, %v1114
        %1116 = vmatprep.mubr.bf16.mxu0 0
        %1117 = vmatmul.mubr.bf16.gmra.mrb[0].mxu0 %v940
        %v1118 = vpop.f32.mrb[0].mxu0
        %v1119 = vadd.f32 %v494, %v1118
        %v1120 = vpop.f32.mrb[0].mxu0
        %v1121 = vadd.f32 %v494, %v1120
        %v1122 = vpop.f32.mrb[0].mxu0
        %v1123 = vadd.f32 %v499, %v1122
        %v1124 = vpop.f32.mrb[0].mxu0
        %v1125 = vadd.f32 %v499, %v1124
        %1126 = vmatprep.mubr.bf16.mxu0 0
        %1127 = vmatmul.mubr.bf16.gmra.mrb[0].mxu0 %v943
        %v1128 = vpop.f32.mrb[0].mxu0
        %v1129 = vadd.f32 %v504, %v1128
        %v1130 = vpop.f32.mrb[0].mxu0
        %v1131 = vadd.f32 %v504, %v1130
        %v1132 = vpop.f32.mrb[0].mxu0
        %v1133 = vadd.f32 %v509, %v1132
        %v1134 = vpop.f32.mrb[0].mxu0
        %v1135 = vadd.f32 %v509, %v1134
        %1136 = vmatprep.mubr.bf16.mxu0 0
        %1137 = vmatmul.mubr.bf16.gmra.mrb[0].mxu0 %v946
        %v1138 = vpop.f32.mrb[0].mxu0
        %v1139 = vadd.f32 %v514, %v1138
        %v1140 = vpop.f32.mrb[0].mxu0
        %v1141 = vadd.f32 %v514, %v1140
        %v1142 = vpop.f32.mrb[0].mxu0
        %v1143 = vadd.f32 %v519, %v1142
        %v1144 = vpop.f32.mrb[0].mxu0
        %v1145 = vadd.f32 %v519, %v1144
        %1146 = vmatprep.mubr.bf16.mxu0 0
        %1147 = vmatmul.mubr.bf16.gmra.mrb[0].mxu0 %v949
        %v1148 = vpop.f32.mrb[0].mxu0
        %v1149 = vadd.f32 %v524, %v1148
        %v1150 = vpop.f32.mrb[0].mxu0
        %v1151 = vadd.f32 %v524, %v1150
        %v1152 = vpop.f32.mrb[0].mxu0
        %v1153 = vadd.f32 %v529, %v1152
        %v1154 = vpop.f32.mrb[0].mxu0
        %v1155 = vadd.f32 %v529, %v1154
        %1156 = vmatprep.mubr.bf16.mxu0 0
        %1157 = vmatmul.mubr.bf16.gmra.mrb[0].mxu0 %v952
        %v1158 = vpop.f32.mrb[0].mxu0
        %v1159 = vadd.f32 %v534, %v1158
        %v1160 = vpop.f32.mrb[0].mxu0
        %v1161 = vadd.f32 %v534, %v1160
        %v1162 = vpop.f32.mrb[0].mxu0
        %v1163 = vadd.f32 %v539, %v1162
        %v1164 = vpop.f32.mrb[0].mxu0
        %v1165 = vadd.f32 %v539, %v1164
        %1166 = vmatprep.mubr.bf16.mxu0 0
        %1167 = vmatmul.mubr.bf16.gmra.mrb[0].mxu0 %v955
        %v1168 = vpop.f32.mrb[0].mxu0
        %v1169 = vadd.f32 %v544, %v1168
        %v1170 = vpop.f32.mrb[0].mxu0
        %v1171 = vadd.f32 %v544, %v1170
        %v1172 = vpop.f32.mrb[0].mxu0
        %v1173 = vadd.f32 %v549, %v1172
        %v1174 = vpop.f32.mrb[0].mxu0
        %v1175 = vadd.f32 %v549, %v1174
        %1176 = vmatprep.mubr.bf16.mxu0 0
        %1177 = vmatmul.mubr.bf16.gmra.mrb[0].mxu0 %v958
        %v1178 = vpop.f32.mrb[0].mxu0
        %v1179 = vadd.f32 %v554, %v1178
        %v1180 = vpop.f32.mrb[0].mxu0
        %v1181 = vadd.f32 %v554, %v1180
        %v1182 = vpop.f32.mrb[0].mxu0
        %v1183 = vadd.f32 %v559, %v1182
        %v1184 = vpop.f32.mrb[0].mxu0
        %v1185 = vadd.f32 %v559, %v1184
        %1186 = vmatprep.mubr.bf16.mxu0 0
        %1187 = vmatmul.mubr.bf16.gmra.mrb[0].mxu0 %v961
        %v1188 = vpop.f32.mrb[0].mxu0
        %v1189 = vadd.f32 %v564, %v1188
        %v1190 = vpop.f32.mrb[0].mxu0
        %v1191 = vadd.f32 %v564, %v1190
        %v1192 = vpop.f32.mrb[0].mxu0
        %v1193 = vadd.f32 %v569, %v1192
        %v1194 = vpop.f32.mrb[0].mxu0
        %v1195 = vadd.f32 %v569, %v1194
        %1196 = vmatprep.mubr.bf16.mxu0 0
        %1197 = vmatmul.mubr.bf16.gmra.mrb[0].mxu0 %v964
        %v1198 = vpop.f32.mrb[0].mxu0
        %v1199 = vadd.f32 %v574, %v1198
        %v1200 = vpop.f32.mrb[0].mxu0
        %v1201 = vadd.f32 %v574, %v1200
        %v1202 = vpop.f32.mrb[0].mxu0
        %v1203 = vadd.f32 %v579, %v1202
        %v1204 = vpop.f32.mrb[0].mxu0
        %v1205 = vadd.f32 %v579, %v1204
        %1206 = vmatprep.mubr.bf16.mxu0 0
        %1207 = vmatmul.mubr.bf16.gmra.mrb[0].mxu0 %v967
        %v1208 = vpop.f32.mrb[0].mxu0
        %v1209 = vadd.f32 %v584, %v1208
        %v1210 = vpop.f32.mrb[0].mxu0
        %v1211 = vadd.f32 %v584, %v1210
        %v1212 = vpop.f32.mrb[0].mxu0
        %v1213 = vadd.f32 %v589, %v1212
        %v1214 = vpop.f32.mrb[0].mxu0
        %v1215 = vadd.f32 %v589, %v1214
        %1216 = vmatprep.mubr.bf16.mxu0 0
        %1217 = vmatmul.mubr.bf16.gmra.mrb[0].mxu0 %v970
        %v1218 = vpop.f32.mrb[0].mxu0
        %v1219 = vadd.f32 %v594, %v1218
        %v1220 = vpop.f32.mrb[0].mxu0
        %v1221 = vadd.f32 %v594, %v1220
        %v1222 = vpop.f32.mrb[0].mxu0
        %v1223 = vadd.f32 %v599, %v1222
        %v1224 = vpop.f32.mrb[0].mxu0
        %v1225 = vadd.f32 %v599, %v1224
        %1226 = vmatprep.mubr.bf16.mxu0 0
        %1227 = vmatmul.mubr.bf16.gmra.mrb[0].mxu0 %v973
        %v1228 = vpop.f32.mrb[0].mxu0
        %v1229 = vadd.f32 %v604, %v1228
        %v1230 = vpop.f32.mrb[0].mxu0
        %v1231 = vadd.f32 %v604, %v1230
        %v1232 = vpop.f32.mrb[0].mxu0
        %v1233 = vadd.f32 %v609, %v1232
        %v1234 = vpop.f32.mrb[0].mxu0
        %v1235 = vadd.f32 %v609, %v1234
        %1236 = vmatprep.mubr.bf16.mxu0 0
        %1237 = vmatmul.mubr.bf16.gmra.mrb[0].mxu0 %v976
        %v1238 = vpop.f32.mrb[0].mxu0
        %v1239 = vadd.f32 %v614, %v1238
        %v1240 = vpop.f32.mrb[0].mxu0
        %v1241 = vadd.f32 %v614, %v1240
        %v1242 = vpop.f32.mrb[0].mxu0
        %v1243 = vadd.f32 %v619, %v1242
        %v1244 = vpop.f32.mrb[0].mxu0
        %v1245 = vadd.f32 %v619, %v1244
        %1246 = vmatprep.mubr.bf16.mxu0 0
        %1247 = vmatmul.mubr.bf16.gmra.mrb[0].mxu0 %v979
        %v1248 = vpop.f32.mrb[0].mxu0
        %v1249 = vadd.f32 %v624, %v1248
        %v1250 = vpop.f32.mrb[0].mxu0
        %v1251 = vadd.f32 %v624, %v1250
        %v1252 = vpop.f32.mrb[0].mxu0
        %v1253 = vadd.f32 %v629, %v1252
        %v1254 = vpop.f32.mrb[0].mxu0
        %v1255 = vadd.f32 %v629, %v1254
        %1256 = vmatprep.mubr.bf16.mxu0 0
        %1257 = vmatmul.mubr.bf16.gmra.mrb[0].mxu0 %v982
        %v1258 = vpop.f32.mrb[0].mxu0
        %v1259 = vadd.f32 %v634, %v1258
        %v1260 = vpop.f32.mrb[0].mxu0
        %v1261 = vadd.f32 %v634, %v1260
        %v1262 = vpop.f32.mrb[0].mxu0
        %v1263 = vadd.f32 %v639, %v1262
        %v1264 = vpop.f32.mrb[0].mxu0
        %v1265 = vadd.f32 %v639, %v1264
        %1266 = vmatprep.mubr.bf16.mxu0 0
        %1267 = vmatmul.mubr.bf16.gmra.mrb[0].mxu0 %v985
        %v1268 = vpop.f32.mrb[0].mxu0
        %v1269 = vadd.f32 %v644, %v1268
        %v1270 = vpop.f32.mrb[0].mxu0
        %v1271 = vadd.f32 %v644, %v1270
        %v1272 = vpop.f32.mrb[0].mxu0
        %v1273 = vadd.f32 %v649, %v1272
        %v1274 = vpop.f32.mrb[0].mxu0
        %v1275 = vadd.f32 %v649, %v1274
        %1276 = vmatprep.mubr.bf16.mxu0 0
        %1277 = vmatmul.mubr.bf16.gmra.mrb[0].mxu0 %v988
        %v1278 = vpop.f32.mrb[0].mxu0
        %v1279 = vadd.f32 %v654, %v1278
        %v1280 = vpop.f32.mrb[0].mxu0
        %v1281 = vadd.f32 %v654, %v1280
        %v1282 = vpop.f32.mrb[0].mxu0
        %v1283 = vadd.f32 %v659, %v1282
        %v1284 = vpop.f32.mrb[0].mxu0
        %v1285 = vadd.f32 %v659, %v1284
        %1286 = vmatprep.mubr.bf16.mxu0 0
        %1287 = vmatmul.mubr.bf16.gmra.mrb[0].mxu0 %v991
        %v1288 = vpop.f32.mrb[0].mxu0
        %v1289 = vadd.f32 %v664, %v1288
        %v1290 = vpop.f32.mrb[0].mxu0
        %v1291 = vadd.f32 %v664, %v1290
        %v1292 = vpop.f32.mrb[0].mxu0
        %v1293 = vadd.f32 %v669, %v1292
        %v1294 = vpop.f32.mrb[0].mxu0
        %v1295 = vadd.f32 %v669, %v1294
        %1296 = vmatprep.mubr.bf16.mxu0 0
        %1297 = vmatmul.mubr.bf16.gmra.mrb[0].mxu0 %v994
        %v1298 = vpop.f32.mrb[0].mxu0
        %v1299 = vadd.f32 %v674, %v1298
        %v1300 = vpop.f32.mrb[0].mxu0
        %v1301 = vadd.f32 %v674, %v1300
        %v1302 = vpop.f32.mrb[0].mxu0
        %v1303 = vadd.f32 %v679, %v1302
        %v1304 = vpop.f32.mrb[0].mxu0
        %v1305 = vadd.f32 %v679, %v1304
        %1306 = vmatprep.mubr.bf16.mxu0 0
        %1307 = vmatmul.mubr.bf16.gmra.mrb[0].mxu0 %v997
        %v1308 = vpop.f32.mrb[0].mxu0
        %v1309 = vadd.f32 %v684, %v1308
        %v1310 = vpop.f32.mrb[0].mxu0
        %v1311 = vadd.f32 %v684, %v1310
        %v1312 = vpop.f32.mrb[0].mxu0
        %v1313 = vadd.f32 %v689, %v1312
        %v1314 = vpop.f32.mrb[0].mxu0
        %v1315 = vadd.f32 %v689, %v1314
        %1316 = vmatprep.mubr.bf16.mxu0 0
        %1317 = vmatmul.mubr.bf16.gmra.mrb[0].mxu0 %v1000
        %v1318 = vpop.f32.mrb[0].mxu0
        %v1319 = vadd.f32 %v694, %v1318
        %v1320 = vpop.f32.mrb[0].mxu0
        %v1321 = vadd.f32 %v694, %v1320
        %v1322 = vpop.f32.mrb[0].mxu0
        %v1323 = vadd.f32 %v699, %v1322
        %v1324 = vpop.f32.mrb[0].mxu0
        %v1325 = vadd.f32 %v699, %v1324
        %1326 = vmatprep.mubr.bf16.mxu0 0
        %1327 = vmatmul.mubr.bf16.gmra.mrb[0].mxu0 %v1003
        %v1328 = vpop.f32.mrb[0].mxu0
        %v1329 = vadd.f32 %v704, %v1328
        %v1330 = vpop.f32.mrb[0].mxu0
        %v1331 = vadd.f32 %v704, %v1330
        %v1332 = vpop.f32.mrb[0].mxu0
        %v1333 = vadd.f32 %v709, %v1332
        %v1334 = vpop.f32.mrb[0].mxu0
        %v1335 = vadd.f32 %v709, %v1334
        %1336 = vmatprep.mubr.bf16.mxu0 0
        %1337 = vmatmul.mubr.bf16.gmra.mrb[0].mxu0 %v1006
        %v1338 = vpop.f32.mrb[0].mxu0
        %v1339 = vadd.f32 %v714, %v1338
        %v1340 = vpop.f32.mrb[0].mxu0
        %v1341 = vadd.f32 %v714, %v1340
        %v1342 = vpop.f32.mrb[0].mxu0
        %v1343 = vadd.f32 %v719, %v1342
        %v1344 = vpop.f32.mrb[0].mxu0
        %v1345 = vadd.f32 %v719, %v1344
        %1346 = vmatprep.mubr.bf16.mxu0 0
        %1347 = vmatmul.mubr.bf16.gmra.mrb[0].mxu0 %v1009
        %v1348 = vpop.f32.mrb[0].mxu0
        %v1349 = vadd.f32 %v724, %v1348
        %v1350 = vpop.f32.mrb[0].mxu0
        %v1351 = vadd.f32 %v724, %v1350
        %v1352 = vpop.f32.mrb[0].mxu0
        %v1353 = vadd.f32 %v729, %v1352
        %v1354 = vpop.f32.mrb[0].mxu0
        %v1355 = vadd.f32 %v729, %v1354
        %1356 = vmatprep.mubr.bf16.mxu0 0
        %1357 = vmatmul.mubr.bf16.gmra.mrb[0].mxu0 %v1012
        %v1358 = vpop.f32.mrb[0].mxu0
        %v1359 = vadd.f32 %v734, %v1358
        %v1360 = vpop.f32.mrb[0].mxu0
        %v1361 = vadd.f32 %v734, %v1360
        %v1362 = vpop.f32.mrb[0].mxu0
        %v1363 = vadd.f32 %v739, %v1362
        %v1364 = vpop.f32.mrb[0].mxu0
        %v1365 = vadd.f32 %v739, %v1364
        %1366 = vmatprep.mubr.bf16.mxu0 0
        %1367 = vmatmul.mubr.bf16.gmra.mrb[0].mxu0 %v1015
        %v1368 = vpop.f32.mrb[0].mxu0
        %v1369 = vadd.f32 %v744, %v1368
        %v1370 = vpop.f32.mrb[0].mxu0
        %v1371 = vadd.f32 %v744, %v1370
        %v1372 = vpop.f32.mrb[0].mxu0
        %v1373 = vadd.f32 %v749, %v1372
        %v1374 = vpop.f32.mrb[0].mxu0
        %v1375 = vadd.f32 %v749, %v1374
        %1376 = vdwg.mxu0
        %v1377 = vmax.f32 %v1059, 0.0
        %v1378 = vmax.f32 %v1061, 0.0
        %v1379 = vmax.f32 %v1063, 0.0
        %v1380 = vmax.f32 %v1065, 0.0
        %v1381 = vmax.f32 %v1069, 0.0
        %v1382 = vmax.f32 %v1071, 0.0
        %v1383 = vmax.f32 %v1073, 0.0
        %v1384 = vmax.f32 %v1075, 0.0
        %v1385 = vmax.f32 %v1079, 0.0
        %v1386 = vmax.f32 %v1081, 0.0
        %v1387 = vmax.f32 %v1083, 0.0
        %v1388 = vmax.f32 %v1085, 0.0
        %v1389 = vmax.f32 %v1089, 0.0
        %v1390 = vmax.f32 %v1091, 0.0
        %v1391 = vmax.f32 %v1093, 0.0
        %v1392 = vmax.f32 %v1095, 0.0
        %v1393 = vmax.f32 %v1099, 0.0
        %v1394 = vmax.f32 %v1101, 0.0
        %v1395 = vmax.f32 %v1103, 0.0
        %v1396 = vmax.f32 %v1105, 0.0
        %v1397 = vmax.f32 %v1109, 0.0
        %v1398 = vmax.f32 %v1111, 0.0
        %v1399 = vmax.f32 %v1113, 0.0
        %v1400 = vmax.f32 %v1115, 0.0
        %v1401 = vmax.f32 %v1119, 0.0
        %v1402 = vmax.f32 %v1121, 0.0
        %v1403 = vmax.f32 %v1123, 0.0
        %v1404 = vmax.f32 %v1125, 0.0
        %v1405 = vmax.f32 %v1129, 0.0
        %v1406 = vmax.f32 %v1131, 0.0
        %v1407 = vmax.f32 %v1133, 0.0
        %v1408 = vmax.f32 %v1135, 0.0
        %v1409 = vmax.f32 %v1139, 0.0
        %v1410 = vmax.f32 %v1141, 0.0
        %v1411 = vmax.f32 %v1143, 0.0
        %v1412 = vmax.f32 %v1145, 0.0
        %v1413 = vmax.f32 %v1149, 0.0
        %v1414 = vmax.f32 %v1151, 0.0
        %v1415 = vmax.f32 %v1153, 0.0
        %v1416 = vmax.f32 %v1155, 0.0
        %v1417 = vmax.f32 %v1159, 0.0
        %v1418 = vmax.f32 %v1161, 0.0
        %v1419 = vmax.f32 %v1163, 0.0
        %v1420 = vmax.f32 %v1165, 0.0
        %v1421 = vmax.f32 %v1169, 0.0
        %v1422 = vmax.f32 %v1171, 0.0
        %v1423 = vmax.f32 %v1173, 0.0
        %v1424 = vmax.f32 %v1175, 0.0
        %v1425 = vmax.f32 %v1179, 0.0
        %v1426 = vmax.f32 %v1181, 0.0
        %v1427 = vmax.f32 %v1183, 0.0
        %v1428 = vmax.f32 %v1185, 0.0
        %v1429 = vmax.f32 %v1189, 0.0
        %v1430 = vmax.f32 %v1191, 0.0
        %v1431 = vmax.f32 %v1193, 0.0
        %v1432 = vmax.f32 %v1195, 0.0
        %v1433 = vmax.f32 %v1199, 0.0
        %v1434 = vmax.f32 %v1201, 0.0
        %v1435 = vmax.f32 %v1203, 0.0
        %v1436 = vmax.f32 %v1205, 0.0
        %v1437 = vmax.f32 %v1209, 0.0
        %v1438 = vmax.f32 %v1211, 0.0
        %v1439 = vmax.f32 %v1213, 0.0
        %v1440 = vmax.f32 %v1215, 0.0
        %v1441 = vmax.f32 %v1219, 0.0
        %v1442 = vmax.f32 %v1221, 0.0
        %v1443 = vmax.f32 %v1223, 0.0
        %v1444 = vmax.f32 %v1225, 0.0
        %v1445 = vmax.f32 %v1229, 0.0
        %v1446 = vmax.f32 %v1231, 0.0
        %v1447 = vmax.f32 %v1233, 0.0
        %v1448 = vmax.f32 %v1235, 0.0
        %v1449 = vmax.f32 %v1239, 0.0
        %v1450 = vmax.f32 %v1241, 0.0
        %v1451 = vmax.f32 %v1243, 0.0
        %v1452 = vmax.f32 %v1245, 0.0
        %v1453 = vmax.f32 %v1249, 0.0
        %v1454 = vmax.f32 %v1251, 0.0
        %v1455 = vmax.f32 %v1253, 0.0
        %v1456 = vmax.f32 %v1255, 0.0
        %v1457 = vmax.f32 %v1259, 0.0
        %v1458 = vmax.f32 %v1261, 0.0
        %v1459 = vmax.f32 %v1263, 0.0
        %v1460 = vmax.f32 %v1265, 0.0
        %v1461 = vmax.f32 %v1269, 0.0
        %v1462 = vmax.f32 %v1271, 0.0
        %v1463 = vmax.f32 %v1273, 0.0
        %v1464 = vmax.f32 %v1275, 0.0
        %v1465 = vmax.f32 %v1279, 0.0
        %v1466 = vmax.f32 %v1281, 0.0
        %v1467 = vmax.f32 %v1283, 0.0
        %v1468 = vmax.f32 %v1285, 0.0
        %v1469 = vmax.f32 %v1289, 0.0
        %v1470 = vmax.f32 %v1291, 0.0
        %v1471 = vmax.f32 %v1293, 0.0
        %v1472 = vmax.f32 %v1295, 0.0
        %v1473 = vmax.f32 %v1299, 0.0
        %v1474 = vmax.f32 %v1301, 0.0
        %v1475 = vmax.f32 %v1303, 0.0
        %v1476 = vmax.f32 %v1305, 0.0
        %v1477 = vmax.f32 %v1309, 0.0
        %v1478 = vmax.f32 %v1311, 0.0
        %v1479 = vmax.f32 %v1313, 0.0
        %v1480 = vmax.f32 %v1315, 0.0
        %v1481 = vmax.f32 %v1319, 0.0
        %v1482 = vmax.f32 %v1321, 0.0
        %v1483 = vmax.f32 %v1323, 0.0
        %v1484 = vmax.f32 %v1325, 0.0
        %v1485 = vmax.f32 %v1329, 0.0
        %v1486 = vmax.f32 %v1331, 0.0
        %v1487 = vmax.f32 %v1333, 0.0
        %v1488 = vmax.f32 %v1335, 0.0
        %v1489 = vmax.f32 %v1339, 0.0
        %v1490 = vmax.f32 %v1341, 0.0
        %v1491 = vmax.f32 %v1343, 0.0
        %v1492 = vmax.f32 %v1345, 0.0
        %v1493 = vmax.f32 %v1349, 0.0
        %v1494 = vmax.f32 %v1351, 0.0
        %v1495 = vmax.f32 %v1353, 0.0
        %v1496 = vmax.f32 %v1355, 0.0
        %v1497 = vmax.f32 %v1359, 0.0
        %v1498 = vmax.f32 %v1361, 0.0
        %v1499 = vmax.f32 %v1363, 0.0
        %v1500 = vmax.f32 %v1365, 0.0
        %v1501 = vmax.f32 %v1369, 0.0
        %v1502 = vmax.f32 %v1371, 0.0
        %v1503 = vmax.f32 %v1373, 0.0
        %v1504 = vmax.f32 %v1375, 0.0
        %v1505 = vadd.f32 %v1377, %v1378
        %v1506 = vadd.f32 %v1379, %v1380
        %v1507 = vadd.f32 %v1381, %v1382
        %v1508 = vadd.f32 %v1383, %v1384
        %v1509 = vadd.f32 %v1385, %v1386
        %v1510 = vadd.f32 %v1387, %v1388
        %v1511 = vadd.f32 %v1389, %v1390
        %v1512 = vadd.f32 %v1391, %v1392
        %v1513 = vadd.f32 %v1393, %v1394
        %v1514 = vadd.f32 %v1395, %v1396
        %v1515 = vadd.f32 %v1397, %v1398
        %v1516 = vadd.f32 %v1399, %v1400
        %v1517 = vadd.f32 %v1401, %v1402
        %v1518 = vadd.f32 %v1403, %v1404
        %v1519 = vadd.f32 %v1405, %v1406
        %v1520 = vadd.f32 %v1407, %v1408
        %v1521 = vadd.f32 %v1409, %v1410
        %v1522 = vadd.f32 %v1411, %v1412
        %v1523 = vadd.f32 %v1413, %v1414
        %v1524 = vadd.f32 %v1415, %v1416
        %v1525 = vadd.f32 %v1417, %v1418
        %v1526 = vadd.f32 %v1419, %v1420
        %v1527 = vadd.f32 %v1421, %v1422
        %v1528 = vadd.f32 %v1423, %v1424
        %v1529 = vadd.f32 %v1425, %v1426
        %v1530 = vadd.f32 %v1427, %v1428
        %v1531 = vadd.f32 %v1429, %v1430
        %v1532 = vadd.f32 %v1431, %v1432
        %v1533 = vadd.f32 %v1433, %v1434
        %v1534 = vadd.f32 %v1435, %v1436
        %v1535 = vadd.f32 %v1437, %v1438
        %v1536 = vadd.f32 %v1439, %v1440
        %v1537 = vadd.f32 %v1441, %v1442
        %v1538 = vadd.f32 %v1443, %v1444
        %v1539 = vadd.f32 %v1445, %v1446
        %v1540 = vadd.f32 %v1447, %v1448
        %v1541 = vadd.f32 %v1449, %v1450
        %v1542 = vadd.f32 %v1451, %v1452
        %v1543 = vadd.f32 %v1453, %v1454
        %v1544 = vadd.f32 %v1455, %v1456
        %v1545 = vadd.f32 %v1457, %v1458
        %v1546 = vadd.f32 %v1459, %v1460
        %v1547 = vadd.f32 %v1461, %v1462
        %v1548 = vadd.f32 %v1463, %v1464
        %v1549 = vadd.f32 %v1465, %v1466
        %v1550 = vadd.f32 %v1467, %v1468
        %v1551 = vadd.f32 %v1469, %v1470
        %v1552 = vadd.f32 %v1471, %v1472
        %v1553 = vadd.f32 %v1473, %v1474
        %v1554 = vadd.f32 %v1475, %v1476
        %v1555 = vadd.f32 %v1477, %v1478
        %v1556 = vadd.f32 %v1479, %v1480
        %v1557 = vadd.f32 %v1481, %v1482
        %v1558 = vadd.f32 %v1483, %v1484
        %v1559 = vadd.f32 %v1485, %v1486
        %v1560 = vadd.f32 %v1487, %v1488
        %v1561 = vadd.f32 %v1489, %v1490
        %v1562 = vadd.f32 %v1491, %v1492
        %v1563 = vadd.f32 %v1493, %v1494
        %v1564 = vadd.f32 %v1495, %v1496
        %v1565 = vadd.f32 %v1497, %v1498
        %v1566 = vadd.f32 %v1499, %v1500
        %v1567 = vadd.f32 %v1501, %v1502
        %v1568 = vadd.f32 %v1503, %v1504
        %v1569 = vld [vmem:[#allocation2] sm:$0xff]
        %v1570 = vld [vmem:[#allocation2 + $0x8] sm:$0xff]
        %v1571 = vld [vmem:[#allocation2 + $0x10] sm:$0xff]
        %v1572 = vld [vmem:[#allocation2 + $0x18] sm:$0xff]
        %v1573 = vld [vmem:[#allocation2 + $0x20] sm:$0xff]
        %v1574 = vld [vmem:[#allocation2 + $0x28] sm:$0xff]
        %v1575 = vld [vmem:[#allocation2 + $0x30] sm:$0xff]
        %v1576 = vld [vmem:[#allocation2 + $0x38] sm:$0xff]
        %v1577 = vld [vmem:[#allocation2 + $0x40] sm:$0xff]
        %v1578 = vld [vmem:[#allocation2 + $0x48] sm:$0xff]
        %v1579 = vld [vmem:[#allocation2 + $0x50] sm:$0xff]
        %v1580 = vld [vmem:[#allocation2 + $0x58] sm:$0xff]
        %v1581 = vld [vmem:[#allocation2 + $0x60] sm:$0xff]
        %v1582 = vld [vmem:[#allocation2 + $0x68] sm:$0xff]
        %v1583 = vld [vmem:[#allocation2 + $0x70] sm:$0xff]
        %v1584 = vld [vmem:[#allocation2 + $0x78] sm:$0xff]
        %v1585 = vld [vmem:[#allocation2 + $0x80] sm:$0xff]
        %v1586 = vld [vmem:[#allocation2 + $0x88] sm:$0xff]
        %v1587 = vld [vmem:[#allocation2 + $0x90] sm:$0xff]
        %v1588 = vld [vmem:[#allocation2 + $0x98] sm:$0xff]
        %v1589 = vld [vmem:[#allocation2 + $0xa0] sm:$0xff]
        %v1590 = vld [vmem:[#allocation2 + $0xa8] sm:$0xff]
        %v1591 = vld [vmem:[#allocation2 + $0xb0] sm:$0xff]
        %v1592 = vld [vmem:[#allocation2 + $0xb8] sm:$0xff]
        %v1593 = vld [vmem:[#allocation2 + $0xc0] sm:$0xff]
        %v1594 = vld [vmem:[#allocation2 + $0xc8] sm:$0xff]
        %v1595 = vld [vmem:[#allocation2 + $0xd0] sm:$0xff]
        %v1596 = vld [vmem:[#allocation2 + $0xd8] sm:$0xff]
        %v1597 = vld [vmem:[#allocation2 + $0xe0] sm:$0xff]
        %v1598 = vld [vmem:[#allocation2 + $0xe8] sm:$0xff]
        %v1599 = vld [vmem:[#allocation2 + $0xf0] sm:$0xff]
        %v1600 = vld [vmem:[#allocation2 + $0xf8] sm:$0xff]
        %v1601 = vld [vmem:[#allocation2 + $0x100] sm:$0xff]
        %v1602 = vld [vmem:[#allocation2 + $0x108] sm:$0xff]
        %v1603 = vld [vmem:[#allocation2 + $0x110] sm:$0xff]
        %v1604 = vld [vmem:[#allocation2 + $0x118] sm:$0xff]
        %v1605 = vld [vmem:[#allocation2 + $0x120] sm:$0xff]
        %v1606 = vld [vmem:[#allocation2 + $0x128] sm:$0xff]
        %v1607 = vld [vmem:[#allocation2 + $0x130] sm:$0xff]
        %v1608 = vld [vmem:[#allocation2 + $0x138] sm:$0xff]
        %v1609 = vld [vmem:[#allocation2 + $0x140] sm:$0xff]
        %v1610 = vld [vmem:[#allocation2 + $0x148] sm:$0xff]
        %v1611 = vld [vmem:[#allocation2 + $0x150] sm:$0xff]
        %v1612 = vld [vmem:[#allocation2 + $0x158] sm:$0xff]
        %v1613 = vld [vmem:[#allocation2 + $0x160] sm:$0xff]
        %v1614 = vld [vmem:[#allocation2 + $0x168] sm:$0xff]
        %v1615 = vld [vmem:[#allocation2 + $0x170] sm:$0xff]
        %v1616 = vld [vmem:[#allocation2 + $0x178] sm:$0xff]
        %v1617 = vld [vmem:[#allocation2 + $0x180] sm:$0xff]
        %v1618 = vld [vmem:[#allocation2 + $0x188] sm:$0xff]
        %v1619 = vld [vmem:[#allocation2 + $0x190] sm:$0xff]
        %v1620 = vld [vmem:[#allocation2 + $0x198] sm:$0xff]
        %v1621 = vld [vmem:[#allocation2 + $0x1a0] sm:$0xff]
        %v1622 = vld [vmem:[#allocation2 + $0x1a8] sm:$0xff]
        %v1623 = vld [vmem:[#allocation2 + $0x1b0] sm:$0xff]
        %v1624 = vld [vmem:[#allocation2 + $0x1b8] sm:$0xff]
        %v1625 = vld [vmem:[#allocation2 + $0x1c0] sm:$0xff]
        %v1626 = vld [vmem:[#allocation2 + $0x1c8] sm:$0xff]
        %v1627 = vld [vmem:[#allocation2 + $0x1d0] sm:$0xff]
        %v1628 = vld [vmem:[#allocation2 + $0x1d8] sm:$0xff]
        %v1629 = vld [vmem:[#allocation2 + $0x1e0] sm:$0xff]
        %v1630 = vld [vmem:[#allocation2 + $0x1e8] sm:$0xff]
        %v1631 = vld [vmem:[#allocation2 + $0x1f0] sm:$0xff]
        %v1632 = vld [vmem:[#allocation2 + $0x1f8] sm:$0xff]
        %v1633 = vadd.f32 %v1569, %v1505
        %v1634 = vadd.f32 %v1570, %v1506
        %v1635 = vadd.f32 %v1571, %v1507
        %v1636 = vadd.f32 %v1572, %v1508
        %v1637 = vadd.f32 %v1573, %v1509
        %v1638 = vadd.f32 %v1574, %v1510
        %v1639 = vadd.f32 %v1575, %v1511
        %v1640 = vadd.f32 %v1576, %v1512
        %v1641 = vadd.f32 %v1577, %v1513
        %v1642 = vadd.f32 %v1578, %v1514
        %v1643 = vadd.f32 %v1579, %v1515
        %v1644 = vadd.f32 %v1580, %v1516
        %v1645 = vadd.f32 %v1581, %v1517
        %v1646 = vadd.f32 %v1582, %v1518
        %v1647 = vadd.f32 %v1583, %v1519
        %v1648 = vadd.f32 %v1584, %v1520
        %v1649 = vadd.f32 %v1585, %v1521
        %v1650 = vadd.f32 %v1586, %v1522
        %v1651 = vadd.f32 %v1587, %v1523
        %v1652 = vadd.f32 %v1588, %v1524
        %v1653 = vadd.f32 %v1589, %v1525
        %v1654 = vadd.f32 %v1590, %v1526
        %v1655 = vadd.f32 %v1591, %v1527
        %v1656 = vadd.f32 %v1592, %v1528
        %v1657 = vadd.f32 %v1593, %v1529
        %v1658 = vadd.f32 %v1594, %v1530
        %v1659 = vadd.f32 %v1595, %v1531
        %v1660 = vadd.f32 %v1596, %v1532
        %v1661 = vadd.f32 %v1597, %v1533
        %v1662 = vadd.f32 %v1598, %v1534
        %v1663 = vadd.f32 %v1599, %v1535
        %v1664 = vadd.f32 %v1600, %v1536
        %v1665 = vadd.f32 %v1601, %v1537
        %v1666 = vadd.f32 %v1602, %v1538
        %v1667 = vadd.f32 %v1603, %v1539
        %v1668 = vadd.f32 %v1604, %v1540
        %v1669 = vadd.f32 %v1605, %v1541
        %v1670 = vadd.f32 %v1606, %v1542
        %v1671 = vadd.f32 %v1607, %v1543
        %v1672 = vadd.f32 %v1608, %v1544
        %v1673 = vadd.f32 %v1609, %v1545
        %v1674 = vadd.f32 %v1610, %v1546
        %v1675 = vadd.f32 %v1611, %v1547
        %v1676 = vadd.f32 %v1612, %v1548
        %v1677 = vadd.f32 %v1613, %v1549
        %v1678 = vadd.f32 %v1614, %v1550
        %v1679 = vadd.f32 %v1615, %v1551
        %v1680 = vadd.f32 %v1616, %v1552
        %v1681 = vadd.f32 %v1617, %v1553
        %v1682 = vadd.f32 %v1618, %v1554
        %v1683 = vadd.f32 %v1619, %v1555
        %v1684 = vadd.f32 %v1620, %v1556
        %v1685 = vadd.f32 %v1621, %v1557
        %v1686 = vadd.f32 %v1622, %v1558
        %v1687 = vadd.f32 %v1623, %v1559
        %v1688 = vadd.f32 %v1624, %v1560
        %v1689 = vadd.f32 %v1625, %v1561
        %v1690 = vadd.f32 %v1626, %v1562
        %v1691 = vadd.f32 %v1627, %v1563
        %v1692 = vadd.f32 %v1628, %v1564
        %v1693 = vadd.f32 %v1629, %v1565
        %v1694 = vadd.f32 %v1630, %v1566
        %v1695 = vadd.f32 %v1631, %v1567
        %v1696 = vadd.f32 %v1632, %v1568
        %1697 = vst [vmem:[#allocation2] sm:$0xff] %v1633
        %1698 = vst [vmem:[#allocation2 + $0x8] sm:$0xff] %v1634
        %1699 = vst [vmem:[#allocation2 + $0x10] sm:$0xff] %v1635
        %1700 = vst [vmem:[#allocation2 + $0x18] sm:$0xff] %v1636
        %1701 = vst [vmem:[#allocation2 + $0x20] sm:$0xff] %v1637
        %1702 = vst [vmem:[#allocation2 + $0x28] sm:$0xff] %v1638
        %1703 = vst [vmem:[#allocation2 + $0x30] sm:$0xff] %v1639
        %1704 = vst [vmem:[#allocation2 + $0x38] sm:$0xff] %v1640
        %1705 = vst [vmem:[#allocation2 + $0x40] sm:$0xff] %v1641
        %1706 = vst [vmem:[#allocation2 + $0x48] sm:$0xff] %v1642
        %1707 = vst [vmem:[#allocation2 + $0x50] sm:$0xff] %v1643
        %1708 = vst [vmem:[#allocation2 + $0x58] sm:$0xff] %v1644
        %1709 = vst [vmem:[#allocation2 + $0x60] sm:$0xff] %v1645
        %1710 = vst [vmem:[#allocation2 + $0x68] sm:$0xff] %v1646
        %1711 = vst [vmem:[#allocation2 + $0x70] sm:$0xff] %v1647
        %1712 = vst [vmem:[#allocation2 + $0x78] sm:$0xff] %v1648
        %1713 = vst [vmem:[#allocation2 + $0x80] sm:$0xff] %v1649
        %1714 = vst [vmem:[#allocation2 + $0x88] sm:$0xff] %v1650
        %1715 = vst [vmem:[#allocation2 + $0x90] sm:$0xff] %v1651
        %1716 = vst [vmem:[#allocation2 + $0x98] sm:$0xff] %v1652
        %1717 = vst [vmem:[#allocation2 + $0xa0] sm:$0xff] %v1653
        %1718 = vst [vmem:[#allocation2 + $0xa8] sm:$0xff] %v1654
        %1719 = vst [vmem:[#allocation2 + $0xb0] sm:$0xff] %v1655
        %1720 = vst [vmem:[#allocation2 + $0xb8] sm:$0xff] %v1656
        %1721 = vst [vmem:[#allocation2 + $0xc0] sm:$0xff] %v1657
        %1722 = vst [vmem:[#allocation2 + $0xc8] sm:$0xff] %v1658
        %1723 = vst [vmem:[#allocation2 + $0xd0] sm:$0xff] %v1659
        %1724 = vst [vmem:[#allocation2 + $0xd8] sm:$0xff] %v1660
        %1725 = vst [vmem:[#allocation2 + $0xe0] sm:$0xff] %v1661
        %1726 = vst [vmem:[#allocation2 + $0xe8] sm:$0xff] %v1662
        %1727 = vst [vmem:[#allocation2 + $0xf0] sm:$0xff] %v1663
        %1728 = vst [vmem:[#allocation2 + $0xf8] sm:$0xff] %v1664
        %1729 = vst [vmem:[#allocation2 + $0x100] sm:$0xff] %v1665
        %1730 = vst [vmem:[#allocation2 + $0x108] sm:$0xff] %v1666
        %1731 = vst [vmem:[#allocation2 + $0x110] sm:$0xff] %v1667
        %1732 = vst [vmem:[#allocation2 + $0x118] sm:$0xff] %v1668
        %1733 = vst [vmem:[#allocation2 + $0x120] sm:$0xff] %v1669
        %1734 = vst [vmem:[#allocation2 + $0x128] sm:$0xff] %v1670
        %1735 = vst [vmem:[#allocation2 + $0x130] sm:$0xff] %v1671
        %1736 = vst [vmem:[#allocation2 + $0x138] sm:$0xff] %v1672
        %1737 = vst [vmem:[#allocation2 + $0x140] sm:$0xff] %v1673
        %1738 = vst [vmem:[#allocation2 + $0x148] sm:$0xff] %v1674
        %1739 = vst [vmem:[#allocation2 + $0x150] sm:$0xff] %v1675
        %1740 = vst [vmem:[#allocation2 + $0x158] sm:$0xff] %v1676
        %1741 = vst [vmem:[#allocation2 + $0x160] sm:$0xff] %v1677
        %1742 = vst [vmem:[#allocation2 + $0x168] sm:$0xff] %v1678
        %1743 = vst [vmem:[#allocation2 + $0x170] sm:$0xff] %v1679
        %1744 = vst [vmem:[#allocation2 + $0x178] sm:$0xff] %v1680
        %1745 = vst [vmem:[#allocation2 + $0x180] sm:$0xff] %v1681
        %1746 = vst [vmem:[#allocation2 + $0x188] sm:$0xff] %v1682
        %1747 = vst [vmem:[#allocation2 + $0x190] sm:$0xff] %v1683
        %1748 = vst [vmem:[#allocation2 + $0x198] sm:$0xff] %v1684
        %1749 = vst [vmem:[#allocation2 + $0x1a0] sm:$0xff] %v1685
        %1750 = vst [vmem:[#allocation2 + $0x1a8] sm:$0xff] %v1686
        %1751 = vst [vmem:[#allocation2 + $0x1b0] sm:$0xff] %v1687
        %1752 = vst [vmem:[#allocation2 + $0x1b8] sm:$0xff] %v1688
        %1753 = vst [vmem:[#allocation2 + $0x1c0] sm:$0xff] %v1689
        %1754 = vst [vmem:[#allocation2 + $0x1c8] sm:$0xff] %v1690
        %1755 = vst [vmem:[#allocation2 + $0x1d0] sm:$0xff] %v1691
        %1756 = vst [vmem:[#allocation2 + $0x1d8] sm:$0xff] %v1692
        %1757 = vst [vmem:[#allocation2 + $0x1e0] sm:$0xff] %v1693
        %1758 = vst [vmem:[#allocation2 + $0x1e8] sm:$0xff] %v1694
        %1759 = vst [vmem:[#allocation2 + $0x1f0] sm:$0xff] %v1695
        %1760 = vst [vmem:[#allocation2 + $0x1f8] sm:$0xff] %v1696
        // Predicated region
        $region49: #{tpu_custom_call.1} parent=31 // pred_check
          %p1761 = pneg %p234
        $region50: #{tpu_custom_call.1} parent=31 // pred_check_branch
          %1763 = sbr.rel (%p1761) target = $region52
        $region51: #{tpu_custom_call.1} parent=31 // pred_region
          %v1764 = vld [vmem:[#allocation2] sm:$0xff]
          %v1765 = vld [vmem:[#allocation2 + $0x8] sm:$0xff]
          %v1766 = vld [vmem:[#allocation2 + $0x10] sm:$0xff]
          %v1767 = vld [vmem:[#allocation2 + $0x18] sm:$0xff]
          %v1768 = vld [vmem:[#allocation2 + $0x20] sm:$0xff]
          %v1769 = vld [vmem:[#allocation2 + $0x28] sm:$0xff]
          %v1770 = vld [vmem:[#allocation2 + $0x30] sm:$0xff]
          %v1771 = vld [vmem:[#allocation2 + $0x38] sm:$0xff]
          %v1772 = vld [vmem:[#allocation2 + $0x40] sm:$0xff]
          %v1773 = vld [vmem:[#allocation2 + $0x48] sm:$0xff]
          %v1774 = vld [vmem:[#allocation2 + $0x50] sm:$0xff]
          %v1775 = vld [vmem:[#allocation2 + $0x58] sm:$0xff]
          %v1776 = vld [vmem:[#allocation2 + $0x60] sm:$0xff]
          %v1777 = vld [vmem:[#allocation2 + $0x68] sm:$0xff]
          %v1778 = vld [vmem:[#allocation2 + $0x70] sm:$0xff]
          %v1779 = vld [vmem:[#allocation2 + $0x78] sm:$0xff]
          %v1780 = vld [vmem:[#allocation2 + $0x80] sm:$0xff]
          %v1781 = vld [vmem:[#allocation2 + $0x88] sm:$0xff]
          %v1782 = vld [vmem:[#allocation2 + $0x90] sm:$0xff]
          %v1783 = vld [vmem:[#allocation2 + $0x98] sm:$0xff]
          %v1784 = vld [vmem:[#allocation2 + $0xa0] sm:$0xff]
          %v1785 = vld [vmem:[#allocation2 + $0xa8] sm:$0xff]
          %v1786 = vld [vmem:[#allocation2 + $0xb0] sm:$0xff]
          %v1787 = vld [vmem:[#allocation2 + $0xb8] sm:$0xff]
          %v1788 = vld [vmem:[#allocation2 + $0xc0] sm:$0xff]
          %v1789 = vld [vmem:[#allocation2 + $0xc8] sm:$0xff]
          %v1790 = vld [vmem:[#allocation2 + $0xd0] sm:$0xff]
          %v1791 = vld [vmem:[#allocation2 + $0xd8] sm:$0xff]
          %v1792 = vld [vmem:[#allocation2 + $0xe0] sm:$0xff]
          %v1793 = vld [vmem:[#allocation2 + $0xe8] sm:$0xff]
          %v1794 = vld [vmem:[#allocation2 + $0xf0] sm:$0xff]
          %v1795 = vld [vmem:[#allocation2 + $0xf8] sm:$0xff]
          %v1796 = vld [vmem:[#allocation2 + $0x100] sm:$0xff]
          %v1797 = vld [vmem:[#allocation2 + $0x108] sm:$0xff]
          %v1798 = vld [vmem:[#allocation2 + $0x110] sm:$0xff]
          %v1799 = vld [vmem:[#allocation2 + $0x118] sm:$0xff]
          %v1800 = vld [vmem:[#allocation2 + $0x120] sm:$0xff]
          %v1801 = vld [vmem:[#allocation2 + $0x128] sm:$0xff]
          %v1802 = vld [vmem:[#allocation2 + $0x130] sm:$0xff]
          %v1803 = vld [vmem:[#allocation2 + $0x138] sm:$0xff]
          %v1804 = vld [vmem:[#allocation2 + $0x140] sm:$0xff]
          %v1805 = vld [vmem:[#allocation2 + $0x148] sm:$0xff]
          %v1806 = vld [vmem:[#allocation2 + $0x150] sm:$0xff]
          %v1807 = vld [vmem:[#allocation2 + $0x158] sm:$0xff]
          %v1808 = vld [vmem:[#allocation2 + $0x160] sm:$0xff]
          %v1809 = vld [vmem:[#allocation2 + $0x168] sm:$0xff]
          %v1810 = vld [vmem:[#allocation2 + $0x170] sm:$0xff]
          %v1811 = vld [vmem:[#allocation2 + $0x178] sm:$0xff]
          %v1812 = vld [vmem:[#allocation2 + $0x180] sm:$0xff]
          %v1813 = vld [vmem:[#allocation2 + $0x188] sm:$0xff]
          %v1814 = vld [vmem:[#allocation2 + $0x190] sm:$0xff]
          %v1815 = vld [vmem:[#allocation2 + $0x198] sm:$0xff]
          %v1816 = vld [vmem:[#allocation2 + $0x1a0] sm:$0xff]
          %v1817 = vld [vmem:[#allocation2 + $0x1a8] sm:$0xff]
          %v1818 = vld [vmem:[#allocation2 + $0x1b0] sm:$0xff]
          %v1819 = vld [vmem:[#allocation2 + $0x1b8] sm:$0xff]
          %v1820 = vld [vmem:[#allocation2 + $0x1c0] sm:$0xff]
          %v1821 = vld [vmem:[#allocation2 + $0x1c8] sm:$0xff]
          %v1822 = vld [vmem:[#allocation2 + $0x1d0] sm:$0xff]
          %v1823 = vld [vmem:[#allocation2 + $0x1d8] sm:$0xff]
          %v1824 = vld [vmem:[#allocation2 + $0x1e0] sm:$0xff]
          %v1825 = vld [vmem:[#allocation2 + $0x1e8] sm:$0xff]
          %v1826 = vld [vmem:[#allocation2 + $0x1f0] sm:$0xff]
          %v1827 = vld [vmem:[#allocation2 + $0x1f8] sm:$0xff]
          %1828 = vmatprep.subr.mxu0 0.0
          %1829 = vmatpush1.xpose.msra.mxu0 %v1764
          %1830 = vmatprep.subr.mxu0 0.0
          %1831 = vmatpush1.xpose.msra.mxu0 %v1765
          %1832 = vmatprep.subr.mxu0 0.0
          %1833 = vmatpush1.xpose.msra.mxu0 %v1766
          %1834 = vmatprep.subr.mxu0 0.0
          %1835 = vmatpush1.xpose.msra.mxu0 %v1767
          %1836 = vmatprep.subr.mxu0 0.0
          %1837 = vmatpush1.xpose.msra.mxu0 %v1768
          %1838 = vmatprep.subr.mxu0 0.0
          %1839 = vmatpush1.xpose.msra.mxu0 %v1769
          %1840 = vmatprep.subr.mxu0 0.0
          %1841 = vmatpush1.xpose.msra.mxu0 %v1770
          %1842 = vmatprep.subr.mxu0 0.0
          %1843 = vmatpush1.xpose.msra.mxu0 %v1771
          %1844 = vmatprep.subr.mxu0 0.0
          %1845 = vmatpush1.xpose.msra.mxu0 %v1772
          %1846 = vmatprep.subr.mxu0 0.0
          %1847 = vmatpush1.xpose.msra.mxu0 %v1773
          %1848 = vmatprep.subr.mxu0 0.0
          %1849 = vmatpush1.xpose.msra.mxu0 %v1774
          %1850 = vmatprep.subr.mxu0 0.0
          %1851 = vmatpush1.xpose.msra.mxu0 %v1775
          %1852 = vmatprep.subr.mxu0 0.0
          %1853 = vmatpush1.xpose.msra.mxu0 %v1776
          %1854 = vmatprep.subr.mxu0 0.0
          %1855 = vmatpush1.xpose.msra.mxu0 %v1777
          %1856 = vmatprep.subr.mxu0 0.0
          %1857 = vmatpush1.xpose.msra.mxu0 %v1778
          %1858 = vmatprep.subr.mxu0 0.0
          %1859 = vmatpush1.xpose.msra.mxu0 %v1779
          %1860 = vmatprep.subr.mxu0 0.0
          %1861 = vmatpush1.xpose.msra.mxu0 %v1780
          %1862 = vmatprep.subr.mxu0 0.0
          %1863 = vmatpush1.xpose.msra.mxu0 %v1781
          %1864 = vmatprep.subr.mxu0 0.0
          %1865 = vmatpush1.xpose.msra.mxu0 %v1782
          %1866 = vmatprep.subr.mxu0 0.0
          %1867 = vmatpush1.xpose.msra.mxu0 %v1783
          %1868 = vmatprep.subr.mxu0 0.0
          %1869 = vmatpush1.xpose.msra.mxu0 %v1784
          %1870 = vmatprep.subr.mxu0 0.0
          %1871 = vmatpush1.xpose.msra.mxu0 %v1785
          %1872 = vmatprep.subr.mxu0 0.0
          %1873 = vmatpush1.xpose.msra.mxu0 %v1786
          %1874 = vmatprep.subr.mxu0 0.0
          %1875 = vmatpush1.xpose.msra.mxu0 %v1787
          %1876 = vmatprep.subr.mxu0 0.0
          %1877 = vmatpush1.xpose.msra.mxu0 %v1788
          %1878 = vmatprep.subr.mxu0 0.0
          %1879 = vmatpush1.xpose.msra.mxu0 %v1789
          %1880 = vmatprep.subr.mxu0 0.0
          %1881 = vmatpush1.xpose.msra.mxu0 %v1790
          %1882 = vmatprep.subr.mxu0 0.0
          %1883 = vmatpush1.xpose.msra.mxu0 %v1791
          %1884 = vmatprep.subr.mxu0 0.0
          %1885 = vmatpush1.xpose.msra.mxu0 %v1792
          %1886 = vmatprep.subr.mxu0 0.0
          %1887 = vmatpush1.xpose.msra.mxu0 %v1793
          %1888 = vmatprep.subr.mxu0 0.0
          %1889 = vmatpush1.xpose.msra.mxu0 %v1794
          %1890 = vmatprep.subr.mxu0 0.0
          %1891 = vmatpush1.xpose.msra.mxu0 %v1795
          %1892 = vmatprep.mubr.f32.mxu0 0.0
          %1893 = vmatmul.mubr.f32.gmra.mrb[0].mxu0 1.0
          %v1894 = vpop.f32.mrb[0].mxu0
          %v1895 = vadd.f32 0.0, %v1894
          %v1896 = vpop.f32.mrb[0].mxu0
          %v1897 = vadd.f32 0.0, %v1896
          %1898 = vdwg.mxu0
          %1899 = vmatprep.subr.mxu0 0.0
          %1900 = vmatpush1.xpose.msra.mxu0 %v1796
          %1901 = vmatprep.subr.mxu0 0.0
          %1902 = vmatpush1.xpose.msra.mxu0 %v1797
          %1903 = vmatprep.subr.mxu0 0.0
          %1904 = vmatpush1.xpose.msra.mxu0 %v1798
          %1905 = vmatprep.subr.mxu0 0.0
          %1906 = vmatpush1.xpose.msra.mxu0 %v1799
          %1907 = vmatprep.subr.mxu0 0.0
          %1908 = vmatpush1.xpose.msra.mxu0 %v1800
          %1909 = vmatprep.subr.mxu0 0.0
          %1910 = vmatpush1.xpose.msra.mxu0 %v1801
          %1911 = vmatprep.subr.mxu0 0.0
          %1912 = vmatpush1.xpose.msra.mxu0 %v1802
          %1913 = vmatprep.subr.mxu0 0.0
          %1914 = vmatpush1.xpose.msra.mxu0 %v1803
          %1915 = vmatprep.subr.mxu0 0.0
          %1916 = vmatpush1.xpose.msra.mxu0 %v1804
          %1917 = vmatprep.subr.mxu0 0.0
          %1918 = vmatpush1.xpose.msra.mxu0 %v1805
          %1919 = vmatprep.subr.mxu0 0.0
          %1920 = vmatpush1.xpose.msra.mxu0 %v1806
          %1921 = vmatprep.subr.mxu0 0.0
          %1922 = vmatpush1.xpose.msra.mxu0 %v1807
          %1923 = vmatprep.subr.mxu0 0.0
          %1924 = vmatpush1.xpose.msra.mxu0 %v1808
          %1925 = vmatprep.subr.mxu0 0.0
          %1926 = vmatpush1.xpose.msra.mxu0 %v1809
          %1927 = vmatprep.subr.mxu0 0.0
          %1928 = vmatpush1.xpose.msra.mxu0 %v1810
          %1929 = vmatprep.subr.mxu0 0.0
          %1930 = vmatpush1.xpose.msra.mxu0 %v1811
          %1931 = vmatprep.subr.mxu0 0.0
          %1932 = vmatpush1.xpose.msra.mxu0 %v1812
          %1933 = vmatprep.subr.mxu0 0.0
          %1934 = vmatpush1.xpose.msra.mxu0 %v1813
          %1935 = vmatprep.subr.mxu0 0.0
          %1936 = vmatpush1.xpose.msra.mxu0 %v1814
          %1937 = vmatprep.subr.mxu0 0.0
          %1938 = vmatpush1.xpose.msra.mxu0 %v1815
          %1939 = vmatprep.subr.mxu0 0.0
          %1940 = vmatpush1.xpose.msra.mxu0 %v1816
          %1941 = vmatprep.subr.mxu0 0.0
          %1942 = vmatpush1.xpose.msra.mxu0 %v1817
          %1943 = vmatprep.subr.mxu0 0.0
          %1944 = vmatpush1.xpose.msra.mxu0 %v1818
          %1945 = vmatprep.subr.mxu0 0.0
          %1946 = vmatpush1.xpose.msra.mxu0 %v1819
          %1947 = vmatprep.subr.mxu0 0.0
          %1948 = vmatpush1.xpose.msra.mxu0 %v1820
          %1949 = vmatprep.subr.mxu0 0.0
          %1950 = vmatpush1.xpose.msra.mxu0 %v1821
          %1951 = vmatprep.subr.mxu0 0.0
          %1952 = vmatpush1.xpose.msra.mxu0 %v1822
          %1953 = vmatprep.subr.mxu0 0.0
          %1954 = vmatpush1.xpose.msra.mxu0 %v1823
          %1955 = vmatprep.subr.mxu0 0.0
          %1956 = vmatpush1.xpose.msra.mxu0 %v1824
          %1957 = vmatprep.subr.mxu0 0.0
          %1958 = vmatpush1.xpose.msra.mxu0 %v1825
          %1959 = vmatprep.subr.mxu0 0.0
          %1960 = vmatpush1.xpose.msra.mxu0 %v1826
          %1961 = vmatprep.subr.mxu0 0.0
          %1962 = vmatpush1.xpose.msra.mxu0 %v1827
          %1963 = vmatprep.mubr.f32.mxu0 0.0
          %1964 = vmatmul.mubr.f32.gmra.mrb[0].mxu0 1.0
          %v1965 = vpop.f32.mrb[0].mxu0
          %v1966 = vadd.f32 0.0, %v1965
          %v1967 = vpop.f32.mrb[0].mxu0
          %v1968 = vadd.f32 0.0, %v1967
          %1969 = vdwg.mxu0
          %v1970 = vmul.f32 %v1895, 0.00390625
          %v1971 = vmul.f32 %v1897, 0.00390625
          %v1972 = vmul.f32 %v1966, 0.00390625
          %v1973 = vmul.f32 %v1968, 0.00390625
          %v1978 = vcombine.low %v1970, %v1971
          %v1979 = vcombine.low %v1972, %v1973
          %v1981 = vunpack.c.l.s4 1966171168
          %v1982 = vunpack.c.0.s8 %v1981
          %v1983 = vlaneseq
          %v1984 = vshrl.u32 %v1983, 7
          %v1985 = vsub.s32 %v1982, %v1984
          %v1986 = vrot.slane %v1978, %v1985
          %v1988 = vunpack.c.l.s4 1966171168
          %v1989 = vunpack.c.0.s8 %v1988
          %v1990 = vlaneseq
          %v1991 = vshrl.u32 %v1990, 7
          %v1992 = vsub.s32 %v1989, %v1991
          %v1993 = vrot.slane %v1979, %v1992
          %v1994 = vcombine.low %v1986, %v1993
          %v1996 = vunpack.c.l.s4 1966171168
          %v1997 = vunpack.c.0.s8 %v1996
          %v1998 = vlaneseq
          %v1999 = vshrl.u32 %v1998, 7
          %v2000 = vsub.s32 %v1997, %v1999
          %v2001 = vrot.slane %v1994, %v2000
          %v2003 = vlaneseq
          %vm2004 = vcmp.ge.s32.totalorder %v2003, 0
          %vm2005 = vcmp.lt.s32.totalorder %v2003, 512
          %vm2006 = vmand %vm2004, %vm2005
          %2007 = vst.msk [vmem:[%s231] sm:$0xf] %vm2006, %v2001
        $region52: #{tpu_custom_call.1} parent=31 // pred_fallthru
          _
        %s2008 = sand.u32 %s111, 1
        %s2009 = scalar_lea.sflag [#allocation5], %s2008
        %s2010 = sand.u32 %s111, 1
        %s2011 = smul.addr %s2010, 4
        %s2012 = scalar_lea.vmem [#allocation9], %s2011
        // Predicated region
        $region53: #{tpu_custom_call.1} parent=31 // pred_check
          %p2013 = pneg %p121
        $region54: #{tpu_custom_call.1} parent=31 // pred_check_branch
          %2015 = sbr.rel (%p2013) target = $region56
        $region55: #{tpu_custom_call.1} parent=31 // pred_region
          %s2017 = ssub.s32 64, 64
          %2018 = vsyncadd %s2009, %s2017
          %s2019 = smul.addr %s25, 4
          %s2020 = smul.addr %s2019, 16
          %s2021 = scalar_lea.hbm %s3, %s2020
          %s2023 = sshll.u32 %s2012, 4
          %s2024 = int_to_ptr.vmem [resolvable:$true] %s2023
          %2026 = dma.vmem_to_hbm [thread:$0]  %s2024, 64, %s2021, %s2009
        $region56: #{tpu_custom_call.1} parent=31 // pred_fallthru
          _
      $region32: #{tpu_custom_call.1} parent=5 // pred_fallthru
        _
      %p2027 = scmp.le.s32.totalorder 2, %s16
      // Predicated region
      $region57: #{tpu_custom_call.1} parent=5 // pred_check
        %p2028 = pneg %p2027
      $region58: #{tpu_custom_call.1} parent=5 // pred_check_branch
        %2030 = sbr.rel (%p2028) target = $region60
      $region59: #{tpu_custom_call.1} parent=5 // pred_region
        %s2031 = ssub.s32 %s16, 2
        // Predicated region
        $region61: #{tpu_custom_call.1} parent=59 // pred_check
          %p2032 = pneg %p127
        $region62: #{tpu_custom_call.1} parent=59 // pred_check_branch
          %2034 = sbr.rel (%p2032) target = $region64
        $region63: #{tpu_custom_call.1} parent=59 // pred_region
          %s2035 = sand.u32 %s112, 1
          %s2036 = scalar_lea.sflag [#allocation5], %s2035
          %s2037 = sand.u32 %s112, 1
          %s2038 = smul.addr %s2037, 4
          %s2039 = scalar_lea.vmem [#allocation9], %s2038
          %2040 = dma.done %s2036, 64
        $region64: #{tpu_custom_call.1} parent=59 // pred_fallthru
          _
      $region60: #{tpu_custom_call.1} parent=5 // pred_fallthru
        _
    $region6: #{tpu_custom_call.1} parent=1 // loop_footer
      %s20 = sadd.s32 1, %s16
    $region7: #{tpu_custom_call.1} parent=1 // loop_footer_branch
      %15 = sbr.rel target = $region3
    $region8: #{tpu_custom_call.1} parent=1 // loop_exit
      _
    %2041 = vsyncpa [#allocation4], 1
    %s2042 = scalar_lea.sflag [#allocation4], 1
    %2043 = vsyncpa %s2042, 1
    %2044 = vsyncpa [#allocation7], 1
    %2045 = vsyncpa [#allocation5], 1
    %s2046 = scalar_lea.sflag [#allocation5], 1
    %2047 = vsyncpa %s2046, 1

</llo_original>
